<compile_context>
chip_gen: v7x
topology: tpu7x:2x2x1
jax: 0.10.0
libtpu: 0.0.40
codegen_flags: <defaults>
</compile_context>

<pallas_src>
import jax
import jax.numpy as jnp
from jax.experimental import pallas as pl
from jax.experimental.pallas import tpu as pltpu

LANE = 128
SUBLANE = 8


def _round_up(x, m):
    return ((x + m - 1) // m) * m


def gcn_kernel(at_ref, xw2_ref, pool_ref, out_ref):
    """One destination-row tile of the second GraphConv + partial mean pooling.

    grid = (R,), fully parallel: each step owns one (TM, Np) row tile of the
    normalized/transposed adjacency and writes its own (Gp, Hp) partial block:
        h2_tile = relu(A_t_tile @ xw2)           (TM, Hp), f32 MXU accumulation
        out[i]  = pool_cols_tile @ h2_tile       (Gp, Hp)
    The wrapper sums the R partial blocks (mean pooling) and applies W_last.
    """
    h2 = jnp.maximum(
        jnp.dot(at_ref[...], xw2_ref[...], preferred_element_type=jnp.float32),
        0.0)
    out_ref[...] = jnp.dot(pool_ref[...], h2.astype(jnp.bfloat16),
                           preferred_element_type=jnp.float32)


def _vmem_limit_bytes():
    # ~112 MiB scoped limit on 128-MiB parts (v5e/v6e), ~48 MiB on 64-MiB v7x.
    try:
        cap = pltpu.get_tpu_info().vmem_capacity_bytes
    except Exception:
        cap = 64 * 1024 * 1024  # conservative fallback works on every part
    return int(min(max(cap - 16 * 1024 * 1024, 32 * 1024 * 1024),
                   112 * 1024 * 1024))


def _pick_row_tile(Np, Hp, Gp, vmem_budget):
    """Largest destination-row tile whose double-buffered working set fits."""
    for tm in (1024, 512, 256, 128):
        if Np % tm != 0:
            continue
        need = (2 * tm * Np * 2        # A_norm_T row-tile double buffer (bf16)
                + 2 * Np * Hp * 2      # resident xw2 operand (bf16)
                + 2 * Gp * tm * 2      # pooling-column tile double buffer (bf16)
                + 2 * Gp * Hp * 4)     # partial-hg output block (f32)
        if need <= vmem_budget:
            return tm
    return 128


def gcn_forward(A, graph_ids, n_graphs, W1, W2, W_last):
    """A: (N,N) 0/1 adjacency, A[i,j]=1 means edge src i -> dst j.
    graph_ids: (N,) int32 graph membership of each node.
    W1: (in_dim, H), W2: (H, H), W_last: (H, C)   (feat @ W convention)."""
    A = A.astype(jnp.float32)
    N = A.shape[0]
    in_dim, H = W1.shape
    C = W_last.shape[1]
    G = int(n_graphs)

    # Padded sizes: lane-dense last dims; Np a multiple of 512 so the row tile
    # never falls back to 128.
    Np = _round_up(max(N, 512), 512)
    Hp = _round_up(max(H, LANE), LANE)
    Gp = _round_up(max(G, SUBLANE), SUBLANE)

    # ---- graph preprocessing: one fused normalize+transpose+cast+pad pass ----
    in_deg = A.sum(axis=0)                       # (N,) destination degrees
    out_deg = A.sum(axis=1)                      # (N,) source degrees
    norm_src = 1.0 / jnp.sqrt(jnp.maximum(out_deg, 1.0))
    norm_dst = 1.0 / jnp.sqrt(jnp.maximum(in_deg, 1.0))
    at_p = jnp.pad(
        (norm_dst[:, None] * A.T * norm_src[None, :]).astype(jnp.bfloat16),
        ((0, Np - N), (0, Np - N)))              # rows = destination nodes

    # ---- first GraphConv folded into the wrapper (review opt 1) ----
    # Its A-contraction produces only an (Np, 1)-wide result, so doing it here
    # (bf16 operands, f32 accumulation — same numerics as the old kernel sweep)
    # lets the kernel stream A from HBM exactly once.
    h0_p = jnp.pad(in_deg.reshape(N, 1).astype(jnp.bfloat16),
                   ((0, Np - N), (0, 0)))                                  # in_dim == 1
    dd = jnp.dot(at_p, h0_p, preferred_element_type=jnp.float32)           # (Np, 1)
    h1 = jnp.maximum(jnp.dot(dd, W1, preferred_element_type=jnp.float32), 0.0)
    xw2 = jnp.dot(h1, W2, preferred_element_type=jnp.float32)              # (Np, H)
    xw2_p = jnp.pad(xw2.astype(jnp.bfloat16), ((0, 0), (0, Hp - H)))

    # ---- mean-pooling matrix, bf16 ----
    onehot = (graph_ids[None, :] == jnp.arange(G)[:, None]).astype(jnp.float32)
    pool = onehot / jnp.maximum(onehot.sum(axis=1, keepdims=True), 1.0)
    pool_p = jnp.pad(pool.astype(jnp.bfloat16), ((0, Gp - G), (0, Np - N)))

    # ---- tiling / VMEM budget ----
    vmem_limit = _vmem_limit_bytes()
    TM = _pick_row_tile(Np, Hp, Gp, int(0.85 * vmem_limit))
    R = Np // TM

    flops = 2 * Np * Np * Hp + 2 * Gp * Np * Hp
    bytes_accessed = (Np * Np * 2 + Np * Hp * 2 + Gp * Np * 2
                      + R * Gp * Hp * 4)

    partial_hg = pl.pallas_call(
        gcn_kernel,
        out_shape=jax.ShapeDtypeStruct((R, Gp, Hp), jnp.float32),
        grid_spec=pltpu.PrefetchScalarGridSpec(
            num_scalar_prefetch=0,
            grid=(R,),                                     # destination-row tiles
            in_specs=[
                pl.BlockSpec((TM, Np), lambda i: (i, 0)),  # A_norm_T row tile (bf16)
                pl.BlockSpec((Np, Hp), lambda i: (0, 0)),  # xw2 (bf16, stays resident)
                pl.BlockSpec((Gp, TM), lambda i: (0, i)),  # pooling cols for this tile
            ],
            out_specs=pl.BlockSpec((None, Gp, Hp), lambda i: (i, 0, 0)),
        ),
        compiler_params=pltpu.CompilerParams(
            # Each grid step owns a disjoint output block and no cross-step
            # scratch state -> safe to shard across both TensorCores on v7x;
            # harmless on single-core v5e/v6e.
            dimension_semantics=("parallel",),
            vmem_limit_bytes=vmem_limit,
        ),
        cost_estimate=pl.CostEstimate(flops=flops, transcendentals=0,
                                      bytes_accessed=bytes_accessed),
    )(at_p, xw2_p, pool_p)

    hg = partial_hg.sum(axis=0)[:G, :H]            # per-graph mean-pooled features
    return jnp.dot(hg, W_last, preferred_element_type=jnp.float32)   # (G, C)


if __name__ == "__main__":
    key = jax.random.PRNGKey(0)
    k_adj, k_w1, k_w2, k_wl = jax.random.split(key, 4)

    # Small batched graph: 2 graphs with 5 and 7 nodes -> N = 12 nodes total.
    sizes = [5, 7]
    N = sum(sizes)
    G = len(sizes)
    in_dim, hidden_dim, n_classes = 1, 8, 8

    # Block-diagonal random adjacency (no cross-graph edges, no self-loops).
    graph_ids = jnp.concatenate(
        [jnp.full((s,), g, dtype=jnp.int32) for g, s in enumerate(sizes)])
    same_graph = graph_ids[:, None] == graph_ids[None, :]
    rand_edges = jax.random.bernoulli(k_adj, p=0.5, shape=(N, N))
    A = (rand_edges & same_graph & ~jnp.eye(N, dtype=bool)).astype(jnp.float32)

    # Deterministic parameter init (feat @ W convention; Linear stored as W^T).
    W1 = jax.random.normal(k_w1, (in_dim, hidden_dim), jnp.float32) * 0.5
    W2 = jax.random.normal(k_w2, (hidden_dim, hidden_dim), jnp.float32) * 0.5
    W_last = jax.random.normal(k_wl, (hidden_dim, n_classes), jnp.float32) * 0.5

    out = gcn_forward(A, graph_ids, G, W1, W2, W_last)
    jax.block_until_ready(out)

    # Pure-JAX reference of the same math, mirroring the bf16 storage of
    # A / h0 / (h1@W2) / pool / h2 used on the fast path so the check is tight.
    # TODO(synk): bf16 adjacency/features deviate ~3 decimal digits from the
    # f32 PyTorch GraphConv; switch storage to f32 if exact parity is required.
    in_deg = A.sum(0)
    out_deg = A.sum(1)
    An = ((1.0 / jnp.sqrt(jnp.maximum(in_deg, 1.0)))[:, None]
          * A.T * (1.0 / jnp.sqrt(jnp.maximum(out_deg, 1.0)))[None, :])
    An_q = An.astype(jnp.bfloat16).astype(jnp.float32)
    h0_q = in_deg.reshape(N, 1).astype(jnp.bfloat16).astype(jnp.float32)
    h1 = jnp.maximum((An_q @ h0_q) @ W1, 0.0)
    xw2_q = (h1 @ W2).astype(jnp.bfloat16).astype(jnp.float32)
    h2_q = jnp.maximum(An_q @ xw2_q, 0.0).astype(jnp.bfloat16).astype(jnp.float32)
    onehot = (graph_ids[None, :] == jnp.arange(G)[:, None]).astype(jnp.float32)
    pool_q = (onehot / onehot.sum(1, keepdims=True)
              ).astype(jnp.bfloat16).astype(jnp.float32)
    ref = (pool_q @ h2_q) @ W_last
    assert jnp.allclose(out, ref, atol=5e-3, rtol=5e-3), (out, ref)

    print("KERNEL_OK")
</pallas_src>

<mosaic_0001>
module attributes {stable_mosaic.version = 11 : i64} {
  func.func @gcn_kernel(%arg0: i32, %arg1: memref<512x512xbf16, #tpu.memory_space<vmem>>, %arg2: memref<512x128xbf16, #tpu.memory_space<vmem>>, %arg3: memref<8x512xbf16, #tpu.memory_space<vmem>>, %arg4: memref<1x8x128xf32, #tpu.memory_space<vmem>>) attributes {dimension_semantics = [#tpu.dimension_semantics<parallel>], iteration_bounds = array<i64: 1>, scalar_prefetch = 0 : i64, scratch_operands = 0 : i64, tpu.core_type = #tpu.core_type<tc>, window_params = [{transform_indices = @transform_0, window_bounds = array<i64: 512, 512>}, {pipeline_mode = #tpu.pipeline_mode<synchronous>, transform_indices = @transform_1, window_bounds = array<i64: 512, 128>}, {transform_indices = @transform_2, window_bounds = array<i64: 8, 512>}, {transform_indices = @transform_3, window_bounds = array<i64: 1, 8, 128>}]} {
    %c0 = arith.constant 0 : index
    %c0_0 = arith.constant 0 : index
    %0 = vector.load %arg1[%c0, %c0_0] : memref<512x512xbf16, #tpu.memory_space<vmem>>, vector<512x512xbf16>
    %c0_1 = arith.constant 0 : index
    %c0_2 = arith.constant 0 : index
    %1 = vector.load %arg2[%c0_1, %c0_2] : memref<512x128xbf16, #tpu.memory_space<vmem>>, vector<512x128xbf16>
    %cst = arith.constant dense<0.000000e+00> : vector<512x128xf32>
    %2 = tpu.matmul %0, %1, %cst {dimension_numbers = #tpu.dot_dimension_numbers<[1], [0], [0], [1], [0, 0, 1, 1], [], []>} : vector<512x512xbf16>, vector<512x128xbf16>, vector<512x128xf32> -> vector<512x128xf32>
    %cst_3 = arith.constant 0.000000e+00 : f32
    %3 = vector.broadcast %cst_3 : f32 to vector<512x128xf32>
    %4 = arith.maximumf %2, %3 : vector<512x128xf32>
    %c0_4 = arith.constant 0 : index
    %c0_5 = arith.constant 0 : index
    %5 = vector.load %arg3[%c0_4, %c0_5] : memref<8x512xbf16, #tpu.memory_space<vmem>>, vector<8x512xbf16>
    %6 = arith.truncf %4 : vector<512x128xf32> to vector<512x128xbf16>
    %cst_6 = arith.constant dense<0.000000e+00> : vector<8x128xf32>
    %7 = tpu.matmul %5, %6, %cst_6 {dimension_numbers = #tpu.dot_dimension_numbers<[1], [0], [0], [1], [0, 0, 1, 1], [], []>} : vector<8x512xbf16>, vector<512x128xbf16>, vector<8x128xf32> -> vector<8x128xf32>
    %c0_7 = arith.constant 0 : index
    %c0_8 = arith.constant 0 : index
    %c0_9 = arith.constant 0 : index
    %8 = vector.load %arg4[%c0_7, %c0_8, %c0_9] : memref<1x8x128xf32, #tpu.memory_space<vmem>>, vector<1x8x128xf32>
    %9 = vector.shape_cast %8 : vector<1x8x128xf32> to vector<8x128xf32>
    %10 = vector.shape_cast %7 : vector<8x128xf32> to vector<1x8x128xf32>
    tpu.vector_store %arg4[%c0_7, %c0_8, %c0_9], %10 {strides = array<i32>} : memref<1x8x128xf32, #tpu.memory_space<vmem>>, vector<1x8x128xf32>,
    return
  }
  func.func @transform_0(%arg0: i32) -> (i32, i32) {
    %c0_i32 = arith.constant 0 : i32
    %c0_i32_0 = arith.constant 0 : i32
    return %arg0, %c0_i32 : i32, i32
  }
  func.func @transform_1(%arg0: i32) -> (i32, i32) {
    %c0_i32 = arith.constant 0 : i32
    %c0_i32_0 = arith.constant 0 : i32
    %c0_i32_1 = arith.constant 0 : i32
    return %c0_i32, %c0_i32_0 : i32, i32
  }
  func.func @transform_2(%arg0: i32) -> (i32, i32) {
    %c0_i32 = arith.constant 0 : i32
    %c0_i32_0 = arith.constant 0 : i32
    return %c0_i32, %arg0 : i32, i32
  }
  func.func @transform_3(%arg0: i32) -> (i32, i32, i32) {
    %c0_i32 = arith.constant 0 : i32
    %c0_i32_0 = arith.constant 0 : i32
    %c0_i32_1 = arith.constant 0 : i32
    return %arg0, %c0_i32, %c0_i32_0 : i32, i32, i32
  }
}

</mosaic_0001>

<llo_original>
// kernel: tpu_custom_call.1
$region0: #{tpu_custom_call.1}
  #allocation0 [shape = 'u32[]', space=smem, size = 0x4, offset = 0x4, fixed_abs, tag = 'smem constant byte address 0x4 - core index']
  #allocation1 [shape = 'u32[144,128]{1,0:T(1,128)}', space=vmem, size = 0x12000, scoped, tag = 'internal scratch']
  %s0 = inlined_call_operand.hbm [shape: bf16[512,512], index: 0, kind: input, shape index: {}]
  %s1 = inlined_call_operand.hbm [shape: bf16[512,128], index: 1, kind: input, shape index: {}]
  %s2 = inlined_call_operand.hbm [shape: bf16[8,512], index: 2, kind: input, shape index: {}]
  %s3 = inlined_call_operand.hbm [shape: f32[1,8,128], index: 3, kind: output, shape index: {}]
  %s4 = sld [smem:[#allocation0]]
  $region34: #{tpu_custom_call.1} parent=0
    _
  %s6 = ssub.s32 1, %s4
  %s7 = scalar_select 0, %s6, %s4
  $region1: #{tpu_custom_call.1} parent=0
    #allocation2 [shape = 'u8[524288]{0}', space=vmem, size = 0x80000, scoped, tag = 'input window, operand 0, single buffered']
    #allocation3 [shape = 's32[1]{0}', space=sflag, size = 0x4, scoped, tag = 'scoped memory for tpu_custom_call.1']
    #allocation4 [shape = 's32[1]{0}', space=sflag, size = 0x4, scoped, tag = 'scoped memory for tpu_custom_call.1']
    #allocation5 [shape = 'u8[131072]{0}', space=vmem, size = 0x20000, scoped, tag = 'input window, operand 1, single buffered']
    #allocation6 [shape = 's32[1]{0}', space=sflag, size = 0x4, scoped, tag = 'scoped memory for tpu_custom_call.1']
    #allocation7 [shape = 'u8[8192]{0}', space=vmem, size = 0x2000, scoped, tag = 'input window, operand 2, single buffered']
    #allocation8 [shape = 'u8[4096]{0}', space=vmem, size = 0x1000, scoped, tag = 'output window, operand 0, single buffered']
    %8 = vsyncpa [#allocation3], 0
    %9 = vsyncpa [#allocation6], 0
    %10 = vsyncpa [#allocation4], 0
    // Predicated region
    $region2: #{tpu_custom_call.1} parent=1 // pred_check
      _
    $region3: #{tpu_custom_call.1} parent=1 // pred_check_branch
      %12 = sbr.rel (0) target = $region5
    $region4: #{tpu_custom_call.1} parent=1 // pred_region
      %s14 = ssub.s32 16384, 16384
      %15 = vsyncadd [#allocation3], %s14
      %s16 = sshll.u32 [#allocation2], 4
      %s17 = int_to_ptr.vmem [resolvable:$true] %s16
      %22 = dma.hbm_to_vmem [thread:$0]  %s0, 16384, %s17, [#allocation3], 256, 256, 16
    $region5: #{tpu_custom_call.1} parent=1 // pred_fallthru
      _
    // Predicated region
    $region6: #{tpu_custom_call.1} parent=1 // pred_check
      _
    $region7: #{tpu_custom_call.1} parent=1 // pred_check_branch
      %24 = sbr.rel (0) target = $region9
    $region8: #{tpu_custom_call.1} parent=1 // pred_region
      %s26 = ssub.s32 4096, 4096
      %27 = vsyncadd [#allocation6], %s26
      %s28 = sshll.u32 [#allocation5], 4
      %s29 = int_to_ptr.vmem [resolvable:$true] %s28
      %34 = dma.hbm_to_vmem [thread:$0]  %s1, 4096, %s29, [#allocation6], 64, 64, 4
    $region9: #{tpu_custom_call.1} parent=1 // pred_fallthru
      _
    // Predicated region
    $region10: #{tpu_custom_call.1} parent=1 // pred_check
      _
    $region11: #{tpu_custom_call.1} parent=1 // pred_check_branch
      %36 = sbr.rel (0) target = $region13
    $region12: #{tpu_custom_call.1} parent=1 // pred_region
      %s38 = ssub.s32 256, 256
      %39 = vsyncadd [#allocation6], %s38
      %s41 = sshll.u32 [#allocation7], 4
      %s42 = int_to_ptr.vmem [resolvable:$true] %s41
      %44 = dma.hbm_to_vmem [thread:$0]  %s2, 256, %s42, [#allocation6]
    $region13: #{tpu_custom_call.1} parent=1 // pred_fallthru
      _
    // Predicated region
    $region14: #{tpu_custom_call.1} parent=1 // pred_check
      _
    $region15: #{tpu_custom_call.1} parent=1 // pred_check_branch
      %46 = sbr.rel (0) target = $region17
    $region16: #{tpu_custom_call.1} parent=1 // pred_region
      %47 = dma.done [#allocation3], 16384
    $region17: #{tpu_custom_call.1} parent=1 // pred_fallthru
      _
    // Predicated region
    $region18: #{tpu_custom_call.1} parent=1 // pred_check
      _
    $region19: #{tpu_custom_call.1} parent=1 // pred_check_branch
      %49 = sbr.rel (0) target = $region21
    $region20: #{tpu_custom_call.1} parent=1 // pred_region
      %50 = dma.done [#allocation6], 4096
    $region21: #{tpu_custom_call.1} parent=1 // pred_fallthru
      _
    // Predicated region
    $region22: #{tpu_custom_call.1} parent=1 // pred_check
      _
    $region23: #{tpu_custom_call.1} parent=1 // pred_check_branch
      %52 = sbr.rel (0) target = $region25
    $region24: #{tpu_custom_call.1} parent=1 // pred_region
      %53 = dma.done [#allocation6], 256
    $region25: #{tpu_custom_call.1} parent=1 // pred_fallthru
      _
    %v55 = vld [vmem:[#allocation2] sm:$0xff]
    %v56 = vld [vmem:[#allocation2 + $0x8] sm:$0xff]
    %v57 = vld [vmem:[#allocation2 + $0x10] sm:$0xff]
    %v58 = vld [vmem:[#allocation2 + $0x18] sm:$0xff]
    %v59 = vld [vmem:[#allocation2 + $0x20] sm:$0xff]
    %v60 = vld [vmem:[#allocation2 + $0x28] sm:$0xff]
    %v61 = vld [vmem:[#allocation2 + $0x30] sm:$0xff]
    %v62 = vld [vmem:[#allocation2 + $0x38] sm:$0xff]
    %v63 = vld [vmem:[#allocation2 + $0x40] sm:$0xff]
    %v64 = vld [vmem:[#allocation2 + $0x48] sm:$0xff]
    %v65 = vld [vmem:[#allocation2 + $0x50] sm:$0xff]
    %v66 = vld [vmem:[#allocation2 + $0x58] sm:$0xff]
    %v67 = vld [vmem:[#allocation2 + $0x60] sm:$0xff]
    %v68 = vld [vmem:[#allocation2 + $0x68] sm:$0xff]
    %v69 = vld [vmem:[#allocation2 + $0x70] sm:$0xff]
    %v70 = vld [vmem:[#allocation2 + $0x78] sm:$0xff]
    %v71 = vld [vmem:[#allocation2 + $0x80] sm:$0xff]
    %v72 = vld [vmem:[#allocation2 + $0x88] sm:$0xff]
    %v73 = vld [vmem:[#allocation2 + $0x90] sm:$0xff]
    %v74 = vld [vmem:[#allocation2 + $0x98] sm:$0xff]
    %v75 = vld [vmem:[#allocation2 + $0xa0] sm:$0xff]
    %v76 = vld [vmem:[#allocation2 + $0xa8] sm:$0xff]
    %v77 = vld [vmem:[#allocation2 + $0xb0] sm:$0xff]
    %v78 = vld [vmem:[#allocation2 + $0xb8] sm:$0xff]
    %v79 = vld [vmem:[#allocation2 + $0xc0] sm:$0xff]
    %v80 = vld [vmem:[#allocation2 + $0xc8] sm:$0xff]
    %v81 = vld [vmem:[#allocation2 + $0xd0] sm:$0xff]
    %v82 = vld [vmem:[#allocation2 + $0xd8] sm:$0xff]
    %v83 = vld [vmem:[#allocation2 + $0xe0] sm:$0xff]
    %v84 = vld [vmem:[#allocation2 + $0xe8] sm:$0xff]
    %v85 = vld [vmem:[#allocation2 + $0xf0] sm:$0xff]
    %v86 = vld [vmem:[#allocation2 + $0xf8] sm:$0xff]
    %v87 = vld [vmem:[#allocation2 + $0x100] sm:$0xff]
    %v88 = vld [vmem:[#allocation2 + $0x108] sm:$0xff]
    %v89 = vld [vmem:[#allocation2 + $0x110] sm:$0xff]
    %v90 = vld [vmem:[#allocation2 + $0x118] sm:$0xff]
    %v91 = vld [vmem:[#allocation2 + $0x120] sm:$0xff]
    %v92 = vld [vmem:[#allocation2 + $0x128] sm:$0xff]
    %v93 = vld [vmem:[#allocation2 + $0x130] sm:$0xff]
    %v94 = vld [vmem:[#allocation2 + $0x138] sm:$0xff]
    %v95 = vld [vmem:[#allocation2 + $0x140] sm:$0xff]
    %v96 = vld [vmem:[#allocation2 + $0x148] sm:$0xff]
    %v97 = vld [vmem:[#allocation2 + $0x150] sm:$0xff]
    %v98 = vld [vmem:[#allocation2 + $0x158] sm:$0xff]
    %v99 = vld [vmem:[#allocation2 + $0x160] sm:$0xff]
    %v100 = vld [vmem:[#allocation2 + $0x168] sm:$0xff]
    %v101 = vld [vmem:[#allocation2 + $0x170] sm:$0xff]
    %v102 = vld [vmem:[#allocation2 + $0x178] sm:$0xff]
    %v103 = vld [vmem:[#allocation2 + $0x180] sm:$0xff]
    %v104 = vld [vmem:[#allocation2 + $0x188] sm:$0xff]
    %v105 = vld [vmem:[#allocation2 + $0x190] sm:$0xff]
    %v106 = vld [vmem:[#allocation2 + $0x198] sm:$0xff]
    %v107 = vld [vmem:[#allocation2 + $0x1a0] sm:$0xff]
    %v108 = vld [vmem:[#allocation2 + $0x1a8] sm:$0xff]
    %v109 = vld [vmem:[#allocation2 + $0x1b0] sm:$0xff]
    %v110 = vld [vmem:[#allocation2 + $0x1b8] sm:$0xff]
    %v111 = vld [vmem:[#allocation2 + $0x1c0] sm:$0xff]
    %v112 = vld [vmem:[#allocation2 + $0x1c8] sm:$0xff]
    %v113 = vld [vmem:[#allocation2 + $0x1d0] sm:$0xff]
    %v114 = vld [vmem:[#allocation2 + $0x1d8] sm:$0xff]
    %v115 = vld [vmem:[#allocation2 + $0x1e0] sm:$0xff]
    %v116 = vld [vmem:[#allocation2 + $0x1e8] sm:$0xff]
    %v117 = vld [vmem:[#allocation2 + $0x1f0] sm:$0xff]
    %v118 = vld [vmem:[#allocation2 + $0x1f8] sm:$0xff]
    %v119 = vld [vmem:[#allocation2 + $0x200] sm:$0xff]
    %v120 = vld [vmem:[#allocation2 + $0x208] sm:$0xff]
    %v121 = vld [vmem:[#allocation2 + $0x210] sm:$0xff]
    %v122 = vld [vmem:[#allocation2 + $0x218] sm:$0xff]
    %v123 = vld [vmem:[#allocation2 + $0x220] sm:$0xff]
    %v124 = vld [vmem:[#allocation2 + $0x228] sm:$0xff]
    %v125 = vld [vmem:[#allocation2 + $0x230] sm:$0xff]
    %v126 = vld [vmem:[#allocation2 + $0x238] sm:$0xff]
    %v127 = vld [vmem:[#allocation2 + $0x240] sm:$0xff]
    %v128 = vld [vmem:[#allocation2 + $0x248] sm:$0xff]
    %v129 = vld [vmem:[#allocation2 + $0x250] sm:$0xff]
    %v130 = vld [vmem:[#allocation2 + $0x258] sm:$0xff]
    %v131 = vld [vmem:[#allocation2 + $0x260] sm:$0xff]
    %v132 = vld [vmem:[#allocation2 + $0x268] sm:$0xff]
    %v133 = vld [vmem:[#allocation2 + $0x270] sm:$0xff]
    %v134 = vld [vmem:[#allocation2 + $0x278] sm:$0xff]
    %v135 = vld [vmem:[#allocation2 + $0x280] sm:$0xff]
    %v136 = vld [vmem:[#allocation2 + $0x288] sm:$0xff]
    %v137 = vld [vmem:[#allocation2 + $0x290] sm:$0xff]
    %v138 = vld [vmem:[#allocation2 + $0x298] sm:$0xff]
    %v139 = vld [vmem:[#allocation2 + $0x2a0] sm:$0xff]
    %v140 = vld [vmem:[#allocation2 + $0x2a8] sm:$0xff]
    %v141 = vld [vmem:[#allocation2 + $0x2b0] sm:$0xff]
    %v142 = vld [vmem:[#allocation2 + $0x2b8] sm:$0xff]
    %v143 = vld [vmem:[#allocation2 + $0x2c0] sm:$0xff]
    %v144 = vld [vmem:[#allocation2 + $0x2c8] sm:$0xff]
    %v145 = vld [vmem:[#allocation2 + $0x2d0] sm:$0xff]
    %v146 = vld [vmem:[#allocation2 + $0x2d8] sm:$0xff]
    %v147 = vld [vmem:[#allocation2 + $0x2e0] sm:$0xff]
    %v148 = vld [vmem:[#allocation2 + $0x2e8] sm:$0xff]
    %v149 = vld [vmem:[#allocation2 + $0x2f0] sm:$0xff]
    %v150 = vld [vmem:[#allocation2 + $0x2f8] sm:$0xff]
    %v151 = vld [vmem:[#allocation2 + $0x300] sm:$0xff]
    %v152 = vld [vmem:[#allocation2 + $0x308] sm:$0xff]
    %v153 = vld [vmem:[#allocation2 + $0x310] sm:$0xff]
    %v154 = vld [vmem:[#allocation2 + $0x318] sm:$0xff]
    %v155 = vld [vmem:[#allocation2 + $0x320] sm:$0xff]
    %v156 = vld [vmem:[#allocation2 + $0x328] sm:$0xff]
    %v157 = vld [vmem:[#allocation2 + $0x330] sm:$0xff]
    %v158 = vld [vmem:[#allocation2 + $0x338] sm:$0xff]
    %v159 = vld [vmem:[#allocation2 + $0x340] sm:$0xff]
    %v160 = vld [vmem:[#allocation2 + $0x348] sm:$0xff]
    %v161 = vld [vmem:[#allocation2 + $0x350] sm:$0xff]
    %v162 = vld [vmem:[#allocation2 + $0x358] sm:$0xff]
    %v163 = vld [vmem:[#allocation2 + $0x360] sm:$0xff]
    %v164 = vld [vmem:[#allocation2 + $0x368] sm:$0xff]
    %v165 = vld [vmem:[#allocation2 + $0x370] sm:$0xff]
    %v166 = vld [vmem:[#allocation2 + $0x378] sm:$0xff]
    %v167 = vld [vmem:[#allocation2 + $0x380] sm:$0xff]
    %v168 = vld [vmem:[#allocation2 + $0x388] sm:$0xff]
    %v169 = vld [vmem:[#allocation2 + $0x390] sm:$0xff]
    %v170 = vld [vmem:[#allocation2 + $0x398] sm:$0xff]
    %v171 = vld [vmem:[#allocation2 + $0x3a0] sm:$0xff]
    %v172 = vld [vmem:[#allocation2 + $0x3a8] sm:$0xff]
    %v173 = vld [vmem:[#allocation2 + $0x3b0] sm:$0xff]
    %v174 = vld [vmem:[#allocation2 + $0x3b8] sm:$0xff]
    %v175 = vld [vmem:[#allocation2 + $0x3c0] sm:$0xff]
    %v176 = vld [vmem:[#allocation2 + $0x3c8] sm:$0xff]
    %v177 = vld [vmem:[#allocation2 + $0x3d0] sm:$0xff]
    %v178 = vld [vmem:[#allocation2 + $0x3d8] sm:$0xff]
    %v179 = vld [vmem:[#allocation2 + $0x3e0] sm:$0xff]
    %v180 = vld [vmem:[#allocation2 + $0x3e8] sm:$0xff]
    %v181 = vld [vmem:[#allocation2 + $0x3f0] sm:$0xff]
    %v182 = vld [vmem:[#allocation2 + $0x3f8] sm:$0xff]
    %v183 = vld [vmem:[#allocation5] sm:$0xf]
    %v184 = vld [vmem:[#allocation5 + $0x4] sm:$0xf]
    %v185 = vld [vmem:[#allocation5 + $0x8] sm:$0xf]
    %v186 = vld [vmem:[#allocation5 + $0xc] sm:$0xf]
    %v187 = vld [vmem:[#allocation5 + $0x10] sm:$0xf]
    %v188 = vld [vmem:[#allocation5 + $0x14] sm:$0xf]
    %v189 = vld [vmem:[#allocation5 + $0x18] sm:$0xf]
    %v190 = vld [vmem:[#allocation5 + $0x1c] sm:$0xf]
    %v191 = vld [vmem:[#allocation5 + $0x20] sm:$0xf]
    %v192 = vld [vmem:[#allocation5 + $0x24] sm:$0xf]
    %v193 = vld [vmem:[#allocation5 + $0x28] sm:$0xf]
    %v194 = vld [vmem:[#allocation5 + $0x2c] sm:$0xf]
    %v195 = vld [vmem:[#allocation5 + $0x30] sm:$0xf]
    %v196 = vld [vmem:[#allocation5 + $0x34] sm:$0xf]
    %v197 = vld [vmem:[#allocation5 + $0x38] sm:$0xf]
    %v198 = vld [vmem:[#allocation5 + $0x3c] sm:$0xf]
    %v199 = vld [vmem:[#allocation5 + $0x40] sm:$0xf]
    %v200 = vld [vmem:[#allocation5 + $0x44] sm:$0xf]
    %v201 = vld [vmem:[#allocation5 + $0x48] sm:$0xf]
    %v202 = vld [vmem:[#allocation5 + $0x4c] sm:$0xf]
    %v203 = vld [vmem:[#allocation5 + $0x50] sm:$0xf]
    %v204 = vld [vmem:[#allocation5 + $0x54] sm:$0xf]
    %v205 = vld [vmem:[#allocation5 + $0x58] sm:$0xf]
    %v206 = vld [vmem:[#allocation5 + $0x5c] sm:$0xf]
    %v207 = vld [vmem:[#allocation5 + $0x60] sm:$0xf]
    %v208 = vld [vmem:[#allocation5 + $0x64] sm:$0xf]
    %v209 = vld [vmem:[#allocation5 + $0x68] sm:$0xf]
    %v210 = vld [vmem:[#allocation5 + $0x6c] sm:$0xf]
    %v211 = vld [vmem:[#allocation5 + $0x70] sm:$0xf]
    %v212 = vld [vmem:[#allocation5 + $0x74] sm:$0xf]
    %v213 = vld [vmem:[#allocation5 + $0x78] sm:$0xf]
    %v214 = vld [vmem:[#allocation5 + $0x7c] sm:$0xf]
    %v215 = vld [vmem:[#allocation5 + $0x80] sm:$0xf]
    %v216 = vld [vmem:[#allocation5 + $0x84] sm:$0xf]
    %v217 = vld [vmem:[#allocation5 + $0x88] sm:$0xf]
    %v218 = vld [vmem:[#allocation5 + $0x8c] sm:$0xf]
    %v219 = vld [vmem:[#allocation5 + $0x90] sm:$0xf]
    %v220 = vld [vmem:[#allocation5 + $0x94] sm:$0xf]
    %v221 = vld [vmem:[#allocation5 + $0x98] sm:$0xf]
    %v222 = vld [vmem:[#allocation5 + $0x9c] sm:$0xf]
    %v223 = vld [vmem:[#allocation5 + $0xa0] sm:$0xf]
    %v224 = vld [vmem:[#allocation5 + $0xa4] sm:$0xf]
    %v225 = vld [vmem:[#allocation5 + $0xa8] sm:$0xf]
    %v226 = vld [vmem:[#allocation5 + $0xac] sm:$0xf]
    %v227 = vld [vmem:[#allocation5 + $0xb0] sm:$0xf]
    %v228 = vld [vmem:[#allocation5 + $0xb4] sm:$0xf]
    %v229 = vld [vmem:[#allocation5 + $0xb8] sm:$0xf]
    %v230 = vld [vmem:[#allocation5 + $0xbc] sm:$0xf]
    %v231 = vld [vmem:[#allocation5 + $0xc0] sm:$0xf]
    %v232 = vld [vmem:[#allocation5 + $0xc4] sm:$0xf]
    %v233 = vld [vmem:[#allocation5 + $0xc8] sm:$0xf]
    %v234 = vld [vmem:[#allocation5 + $0xcc] sm:$0xf]
    %v235 = vld [vmem:[#allocation5 + $0xd0] sm:$0xf]
    %v236 = vld [vmem:[#allocation5 + $0xd4] sm:$0xf]
    %v237 = vld [vmem:[#allocation5 + $0xd8] sm:$0xf]
    %v238 = vld [vmem:[#allocation5 + $0xdc] sm:$0xf]
    %v239 = vld [vmem:[#allocation5 + $0xe0] sm:$0xf]
    %v240 = vld [vmem:[#allocation5 + $0xe4] sm:$0xf]
    %v241 = vld [vmem:[#allocation5 + $0xe8] sm:$0xf]
    %v242 = vld [vmem:[#allocation5 + $0xec] sm:$0xf]
    %v243 = vld [vmem:[#allocation5 + $0xf0] sm:$0xf]
    %v244 = vld [vmem:[#allocation5 + $0xf4] sm:$0xf]
    %v245 = vld [vmem:[#allocation5 + $0xf8] sm:$0xf]
    %v246 = vld [vmem:[#allocation5 + $0xfc] sm:$0xf]
    %v375 = vunpack.c.l.b16 %v55
    %v376 = vunpack.c.h.b16 %v55
    %v377 = vunpack.c.l.b16 %v56
    %v378 = vunpack.c.h.b16 %v56
    %v379 = vunpack.c.l.b16 %v57
    %v380 = vunpack.c.h.b16 %v57
    %v381 = vunpack.c.l.b16 %v58
    %v382 = vunpack.c.h.b16 %v58
    %v383 = vunpack.c.l.b16 %v59
    %v384 = vunpack.c.h.b16 %v59
    %v385 = vunpack.c.l.b16 %v60
    %v386 = vunpack.c.h.b16 %v60
    %v387 = vunpack.c.l.b16 %v61
    %v388 = vunpack.c.h.b16 %v61
    %v389 = vunpack.c.l.b16 %v62
    %v390 = vunpack.c.h.b16 %v62
    %v391 = vunpack.c.l.b16 %v63
    %v392 = vunpack.c.h.b16 %v63
    %v393 = vunpack.c.l.b16 %v64
    %v394 = vunpack.c.h.b16 %v64
    %v395 = vunpack.c.l.b16 %v65
    %v396 = vunpack.c.h.b16 %v65
    %v397 = vunpack.c.l.b16 %v66
    %v398 = vunpack.c.h.b16 %v66
    %v399 = vunpack.c.l.b16 %v67
    %v400 = vunpack.c.h.b16 %v67
    %v401 = vunpack.c.l.b16 %v68
    %v402 = vunpack.c.h.b16 %v68
    %v403 = vunpack.c.l.b16 %v69
    %v404 = vunpack.c.h.b16 %v69
    %v405 = vunpack.c.l.b16 %v70
    %v406 = vunpack.c.h.b16 %v70
    %v407 = vunpack.c.l.b16 %v71
    %v408 = vunpack.c.h.b16 %v71
    %v409 = vunpack.c.l.b16 %v72
    %v410 = vunpack.c.h.b16 %v72
    %v411 = vunpack.c.l.b16 %v73
    %v412 = vunpack.c.h.b16 %v73
    %v413 = vunpack.c.l.b16 %v74
    %v414 = vunpack.c.h.b16 %v74
    %v415 = vunpack.c.l.b16 %v75
    %v416 = vunpack.c.h.b16 %v75
    %v417 = vunpack.c.l.b16 %v76
    %v418 = vunpack.c.h.b16 %v76
    %v419 = vunpack.c.l.b16 %v77
    %v420 = vunpack.c.h.b16 %v77
    %v421 = vunpack.c.l.b16 %v78
    %v422 = vunpack.c.h.b16 %v78
    %v423 = vunpack.c.l.b16 %v79
    %v424 = vunpack.c.h.b16 %v79
    %v425 = vunpack.c.l.b16 %v80
    %v426 = vunpack.c.h.b16 %v80
    %v427 = vunpack.c.l.b16 %v81
    %v428 = vunpack.c.h.b16 %v81
    %v429 = vunpack.c.l.b16 %v82
    %v430 = vunpack.c.h.b16 %v82
    %v431 = vunpack.c.l.b16 %v83
    %v432 = vunpack.c.h.b16 %v83
    %v433 = vunpack.c.l.b16 %v84
    %v434 = vunpack.c.h.b16 %v84
    %v435 = vunpack.c.l.b16 %v85
    %v436 = vunpack.c.h.b16 %v85
    %v437 = vunpack.c.l.b16 %v86
    %v438 = vunpack.c.h.b16 %v86
    %v439 = vunpack.c.l.b16 %v87
    %v440 = vunpack.c.h.b16 %v87
    %v441 = vunpack.c.l.b16 %v88
    %v442 = vunpack.c.h.b16 %v88
    %v443 = vunpack.c.l.b16 %v89
    %v444 = vunpack.c.h.b16 %v89
    %v445 = vunpack.c.l.b16 %v90
    %v446 = vunpack.c.h.b16 %v90
    %v447 = vunpack.c.l.b16 %v91
    %v448 = vunpack.c.h.b16 %v91
    %v449 = vunpack.c.l.b16 %v92
    %v450 = vunpack.c.h.b16 %v92
    %v451 = vunpack.c.l.b16 %v93
    %v452 = vunpack.c.h.b16 %v93
    %v453 = vunpack.c.l.b16 %v94
    %v454 = vunpack.c.h.b16 %v94
    %v455 = vunpack.c.l.b16 %v95
    %v456 = vunpack.c.h.b16 %v95
    %v457 = vunpack.c.l.b16 %v96
    %v458 = vunpack.c.h.b16 %v96
    %v459 = vunpack.c.l.b16 %v97
    %v460 = vunpack.c.h.b16 %v97
    %v461 = vunpack.c.l.b16 %v98
    %v462 = vunpack.c.h.b16 %v98
    %v463 = vunpack.c.l.b16 %v99
    %v464 = vunpack.c.h.b16 %v99
    %v465 = vunpack.c.l.b16 %v100
    %v466 = vunpack.c.h.b16 %v100
    %v467 = vunpack.c.l.b16 %v101
    %v468 = vunpack.c.h.b16 %v101
    %v469 = vunpack.c.l.b16 %v102
    %v470 = vunpack.c.h.b16 %v102
    %v471 = vunpack.c.l.b16 %v103
    %v472 = vunpack.c.h.b16 %v103
    %v473 = vunpack.c.l.b16 %v104
    %v474 = vunpack.c.h.b16 %v104
    %v475 = vunpack.c.l.b16 %v105
    %v476 = vunpack.c.h.b16 %v105
    %v477 = vunpack.c.l.b16 %v106
    %v478 = vunpack.c.h.b16 %v106
    %v479 = vunpack.c.l.b16 %v107
    %v480 = vunpack.c.h.b16 %v107
    %v481 = vunpack.c.l.b16 %v108
    %v482 = vunpack.c.h.b16 %v108
    %v483 = vunpack.c.l.b16 %v109
    %v484 = vunpack.c.h.b16 %v109
    %v485 = vunpack.c.l.b16 %v110
    %v486 = vunpack.c.h.b16 %v110
    %v487 = vunpack.c.l.b16 %v111
    %v488 = vunpack.c.h.b16 %v111
    %v489 = vunpack.c.l.b16 %v112
    %v490 = vunpack.c.h.b16 %v112
    %v491 = vunpack.c.l.b16 %v113
    %v492 = vunpack.c.h.b16 %v113
    %v493 = vunpack.c.l.b16 %v114
    %v494 = vunpack.c.h.b16 %v114
    %v495 = vunpack.c.l.b16 %v115
    %v496 = vunpack.c.h.b16 %v115
    %v497 = vunpack.c.l.b16 %v116
    %v498 = vunpack.c.h.b16 %v116
    %v499 = vunpack.c.l.b16 %v117
    %v500 = vunpack.c.h.b16 %v117
    %v501 = vunpack.c.l.b16 %v118
    %v502 = vunpack.c.h.b16 %v118
    %v503 = vunpack.c.l.b16 %v119
    %v504 = vunpack.c.h.b16 %v119
    %v505 = vunpack.c.l.b16 %v120
    %v506 = vunpack.c.h.b16 %v120
    %v507 = vunpack.c.l.b16 %v121
    %v508 = vunpack.c.h.b16 %v121
    %v509 = vunpack.c.l.b16 %v122
    %v510 = vunpack.c.h.b16 %v122
    %v511 = vunpack.c.l.b16 %v123
    %v512 = vunpack.c.h.b16 %v123
    %v513 = vunpack.c.l.b16 %v124
    %v514 = vunpack.c.h.b16 %v124
    %v515 = vunpack.c.l.b16 %v125
    %v516 = vunpack.c.h.b16 %v125
    %v517 = vunpack.c.l.b16 %v126
    %v518 = vunpack.c.h.b16 %v126
    %v519 = vunpack.c.l.b16 %v127
    %v520 = vunpack.c.h.b16 %v127
    %v521 = vunpack.c.l.b16 %v128
    %v522 = vunpack.c.h.b16 %v128
    %v523 = vunpack.c.l.b16 %v129
    %v524 = vunpack.c.h.b16 %v129
    %v525 = vunpack.c.l.b16 %v130
    %v526 = vunpack.c.h.b16 %v130
    %v527 = vunpack.c.l.b16 %v131
    %v528 = vunpack.c.h.b16 %v131
    %v529 = vunpack.c.l.b16 %v132
    %v530 = vunpack.c.h.b16 %v132
    %v531 = vunpack.c.l.b16 %v133
    %v532 = vunpack.c.h.b16 %v133
    %v533 = vunpack.c.l.b16 %v134
    %v534 = vunpack.c.h.b16 %v134
    %v535 = vunpack.c.l.b16 %v135
    %v536 = vunpack.c.h.b16 %v135
    %v537 = vunpack.c.l.b16 %v136
    %v538 = vunpack.c.h.b16 %v136
    %v539 = vunpack.c.l.b16 %v137
    %v540 = vunpack.c.h.b16 %v137
    %v541 = vunpack.c.l.b16 %v138
    %v542 = vunpack.c.h.b16 %v138
    %v543 = vunpack.c.l.b16 %v139
    %v544 = vunpack.c.h.b16 %v139
    %v545 = vunpack.c.l.b16 %v140
    %v546 = vunpack.c.h.b16 %v140
    %v547 = vunpack.c.l.b16 %v141
    %v548 = vunpack.c.h.b16 %v141
    %v549 = vunpack.c.l.b16 %v142
    %v550 = vunpack.c.h.b16 %v142
    %v551 = vunpack.c.l.b16 %v143
    %v552 = vunpack.c.h.b16 %v143
    %v553 = vunpack.c.l.b16 %v144
    %v554 = vunpack.c.h.b16 %v144
    %v555 = vunpack.c.l.b16 %v145
    %v556 = vunpack.c.h.b16 %v145
    %v557 = vunpack.c.l.b16 %v146
    %v558 = vunpack.c.h.b16 %v146
    %v559 = vunpack.c.l.b16 %v147
    %v560 = vunpack.c.h.b16 %v147
    %v561 = vunpack.c.l.b16 %v148
    %v562 = vunpack.c.h.b16 %v148
    %v563 = vunpack.c.l.b16 %v149
    %v564 = vunpack.c.h.b16 %v149
    %v565 = vunpack.c.l.b16 %v150
    %v566 = vunpack.c.h.b16 %v150
    %v567 = vunpack.c.l.b16 %v151
    %v568 = vunpack.c.h.b16 %v151
    %v569 = vunpack.c.l.b16 %v152
    %v570 = vunpack.c.h.b16 %v152
    %v571 = vunpack.c.l.b16 %v153
    %v572 = vunpack.c.h.b16 %v153
    %v573 = vunpack.c.l.b16 %v154
    %v574 = vunpack.c.h.b16 %v154
    %v575 = vunpack.c.l.b16 %v155
    %v576 = vunpack.c.h.b16 %v155
    %v577 = vunpack.c.l.b16 %v156
    %v578 = vunpack.c.h.b16 %v156
    %v579 = vunpack.c.l.b16 %v157
    %v580 = vunpack.c.h.b16 %v157
    %v581 = vunpack.c.l.b16 %v158
    %v582 = vunpack.c.h.b16 %v158
    %v583 = vunpack.c.l.b16 %v159
    %v584 = vunpack.c.h.b16 %v159
    %v585 = vunpack.c.l.b16 %v160
    %v586 = vunpack.c.h.b16 %v160
    %v587 = vunpack.c.l.b16 %v161
    %v588 = vunpack.c.h.b16 %v161
    %v589 = vunpack.c.l.b16 %v162
    %v590 = vunpack.c.h.b16 %v162
    %v591 = vunpack.c.l.b16 %v163
    %v592 = vunpack.c.h.b16 %v163
    %v593 = vunpack.c.l.b16 %v164
    %v594 = vunpack.c.h.b16 %v164
    %v595 = vunpack.c.l.b16 %v165
    %v596 = vunpack.c.h.b16 %v165
    %v597 = vunpack.c.l.b16 %v166
    %v598 = vunpack.c.h.b16 %v166
    %v599 = vunpack.c.l.b16 %v167
    %v600 = vunpack.c.h.b16 %v167
    %v601 = vunpack.c.l.b16 %v168
    %v602 = vunpack.c.h.b16 %v168
    %v603 = vunpack.c.l.b16 %v169
    %v604 = vunpack.c.h.b16 %v169
    %v605 = vunpack.c.l.b16 %v170
    %v606 = vunpack.c.h.b16 %v170
    %v607 = vunpack.c.l.b16 %v171
    %v608 = vunpack.c.h.b16 %v171
    %v609 = vunpack.c.l.b16 %v172
    %v610 = vunpack.c.h.b16 %v172
    %v611 = vunpack.c.l.b16 %v173
    %v612 = vunpack.c.h.b16 %v173
    %v613 = vunpack.c.l.b16 %v174
    %v614 = vunpack.c.h.b16 %v174
    %v615 = vunpack.c.l.b16 %v175
    %v616 = vunpack.c.h.b16 %v175
    %v617 = vunpack.c.l.b16 %v176
    %v618 = vunpack.c.h.b16 %v176
    %v619 = vunpack.c.l.b16 %v177
    %v620 = vunpack.c.h.b16 %v177
    %v621 = vunpack.c.l.b16 %v178
    %v622 = vunpack.c.h.b16 %v178
    %v623 = vunpack.c.l.b16 %v179
    %v624 = vunpack.c.h.b16 %v179
    %v625 = vunpack.c.l.b16 %v180
    %v626 = vunpack.c.h.b16 %v180
    %v627 = vunpack.c.l.b16 %v181
    %v628 = vunpack.c.h.b16 %v181
    %v629 = vunpack.c.l.b16 %v182
    %v630 = vunpack.c.h.b16 %v182
    %v631 = vpack.c.b16 %v379, %v375
    %v632 = vpack.c.b16 %v380, %v376
    %v633 = vpack.c.b16 %v381, %v377
    %v634 = vpack.c.b16 %v382, %v378
    %v635 = vpack.c.b16 %v387, %v383
    %v636 = vpack.c.b16 %v388, %v384
    %v637 = vpack.c.b16 %v389, %v385
    %v638 = vpack.c.b16 %v390, %v386
    %v639 = vpack.c.b16 %v395, %v391
    %v640 = vpack.c.b16 %v396, %v392
    %v641 = vpack.c.b16 %v397, %v393
    %v642 = vpack.c.b16 %v398, %v394
    %v643 = vpack.c.b16 %v403, %v399
    %v644 = vpack.c.b16 %v404, %v400
    %v645 = vpack.c.b16 %v405, %v401
    %v646 = vpack.c.b16 %v406, %v402
    %v647 = vpack.c.b16 %v411, %v407
    %v648 = vpack.c.b16 %v412, %v408
    %v649 = vpack.c.b16 %v413, %v409
    %v650 = vpack.c.b16 %v414, %v410
    %v651 = vpack.c.b16 %v419, %v415
    %v652 = vpack.c.b16 %v420, %v416
    %v653 = vpack.c.b16 %v421, %v417
    %v654 = vpack.c.b16 %v422, %v418
    %v655 = vpack.c.b16 %v427, %v423
    %v656 = vpack.c.b16 %v428, %v424
    %v657 = vpack.c.b16 %v429, %v425
    %v658 = vpack.c.b16 %v430, %v426
    %v659 = vpack.c.b16 %v435, %v431
    %v660 = vpack.c.b16 %v436, %v432
    %v661 = vpack.c.b16 %v437, %v433
    %v662 = vpack.c.b16 %v438, %v434
    %v663 = vpack.c.b16 %v443, %v439
    %v664 = vpack.c.b16 %v444, %v440
    %v665 = vpack.c.b16 %v445, %v441
    %v666 = vpack.c.b16 %v446, %v442
    %v667 = vpack.c.b16 %v451, %v447
    %v668 = vpack.c.b16 %v452, %v448
    %v669 = vpack.c.b16 %v453, %v449
    %v670 = vpack.c.b16 %v454, %v450
    %v671 = vpack.c.b16 %v459, %v455
    %v672 = vpack.c.b16 %v460, %v456
    %v673 = vpack.c.b16 %v461, %v457
    %v674 = vpack.c.b16 %v462, %v458
    %v675 = vpack.c.b16 %v467, %v463
    %v676 = vpack.c.b16 %v468, %v464
    %v677 = vpack.c.b16 %v469, %v465
    %v678 = vpack.c.b16 %v470, %v466
    %v679 = vpack.c.b16 %v475, %v471
    %v680 = vpack.c.b16 %v476, %v472
    %v681 = vpack.c.b16 %v477, %v473
    %v682 = vpack.c.b16 %v478, %v474
    %v683 = vpack.c.b16 %v483, %v479
    %v684 = vpack.c.b16 %v484, %v480
    %v685 = vpack.c.b16 %v485, %v481
    %v686 = vpack.c.b16 %v486, %v482
    %v687 = vpack.c.b16 %v491, %v487
    %v688 = vpack.c.b16 %v492, %v488
    %v689 = vpack.c.b16 %v493, %v489
    %v690 = vpack.c.b16 %v494, %v490
    %v691 = vpack.c.b16 %v499, %v495
    %v692 = vpack.c.b16 %v500, %v496
    %v693 = vpack.c.b16 %v501, %v497
    %v694 = vpack.c.b16 %v502, %v498
    %v695 = vpack.c.b16 %v507, %v503
    %v696 = vpack.c.b16 %v508, %v504
    %v697 = vpack.c.b16 %v509, %v505
    %v698 = vpack.c.b16 %v510, %v506
    %v699 = vpack.c.b16 %v515, %v511
    %v700 = vpack.c.b16 %v516, %v512
    %v701 = vpack.c.b16 %v517, %v513
    %v702 = vpack.c.b16 %v518, %v514
    %v703 = vpack.c.b16 %v523, %v519
    %v704 = vpack.c.b16 %v524, %v520
    %v705 = vpack.c.b16 %v525, %v521
    %v706 = vpack.c.b16 %v526, %v522
    %v707 = vpack.c.b16 %v531, %v527
    %v708 = vpack.c.b16 %v532, %v528
    %v709 = vpack.c.b16 %v533, %v529
    %v710 = vpack.c.b16 %v534, %v530
    %v711 = vpack.c.b16 %v539, %v535
    %v712 = vpack.c.b16 %v540, %v536
    %v713 = vpack.c.b16 %v541, %v537
    %v714 = vpack.c.b16 %v542, %v538
    %v715 = vpack.c.b16 %v547, %v543
    %v716 = vpack.c.b16 %v548, %v544
    %v717 = vpack.c.b16 %v549, %v545
    %v718 = vpack.c.b16 %v550, %v546
    %v719 = vpack.c.b16 %v555, %v551
    %v720 = vpack.c.b16 %v556, %v552
    %v721 = vpack.c.b16 %v557, %v553
    %v722 = vpack.c.b16 %v558, %v554
    %v723 = vpack.c.b16 %v563, %v559
    %v724 = vpack.c.b16 %v564, %v560
    %v725 = vpack.c.b16 %v565, %v561
    %v726 = vpack.c.b16 %v566, %v562
    %v727 = vpack.c.b16 %v571, %v567
    %v728 = vpack.c.b16 %v572, %v568
    %v729 = vpack.c.b16 %v573, %v569
    %v730 = vpack.c.b16 %v574, %v570
    %v731 = vpack.c.b16 %v579, %v575
    %v732 = vpack.c.b16 %v580, %v576
    %v733 = vpack.c.b16 %v581, %v577
    %v734 = vpack.c.b16 %v582, %v578
    %v735 = vpack.c.b16 %v587, %v583
    %v736 = vpack.c.b16 %v588, %v584
    %v737 = vpack.c.b16 %v589, %v585
    %v738 = vpack.c.b16 %v590, %v586
    %v739 = vpack.c.b16 %v595, %v591
    %v740 = vpack.c.b16 %v596, %v592
    %v741 = vpack.c.b16 %v597, %v593
    %v742 = vpack.c.b16 %v598, %v594
    %v743 = vpack.c.b16 %v603, %v599
    %v744 = vpack.c.b16 %v604, %v600
    %v745 = vpack.c.b16 %v605, %v601
    %v746 = vpack.c.b16 %v606, %v602
    %v747 = vpack.c.b16 %v611, %v607
    %v748 = vpack.c.b16 %v612, %v608
    %v749 = vpack.c.b16 %v613, %v609
    %v750 = vpack.c.b16 %v614, %v610
    %v751 = vpack.c.b16 %v619, %v615
    %v752 = vpack.c.b16 %v620, %v616
    %v753 = vpack.c.b16 %v621, %v617
    %v754 = vpack.c.b16 %v622, %v618
    %v755 = vpack.c.b16 %v627, %v623
    %v756 = vpack.c.b16 %v628, %v624
    %v757 = vpack.c.b16 %v629, %v625
    %v758 = vpack.c.b16 %v630, %v626
    %v951 = vunpack.c.l.b16 %v183
    %v952 = vunpack.c.l.b16 %v184
    %v953 = vunpack.c.l.b16 %v185
    %v954 = vunpack.c.l.b16 %v186
    %v955 = vunpack.c.l.b16 %v187
    %v956 = vunpack.c.l.b16 %v188
    %v957 = vunpack.c.l.b16 %v189
    %v958 = vunpack.c.l.b16 %v190
    %v959 = vunpack.c.l.b16 %v191
    %v960 = vunpack.c.l.b16 %v192
    %v961 = vunpack.c.l.b16 %v193
    %v962 = vunpack.c.l.b16 %v194
    %v963 = vunpack.c.l.b16 %v195
    %v964 = vunpack.c.l.b16 %v196
    %v965 = vunpack.c.l.b16 %v197
    %v966 = vunpack.c.l.b16 %v198
    %v967 = vunpack.c.l.b16 %v199
    %v968 = vunpack.c.l.b16 %v200
    %v969 = vunpack.c.l.b16 %v201
    %v970 = vunpack.c.l.b16 %v202
    %v971 = vunpack.c.l.b16 %v203
    %v972 = vunpack.c.l.b16 %v204
    %v973 = vunpack.c.l.b16 %v205
    %v974 = vunpack.c.l.b16 %v206
    %v975 = vunpack.c.l.b16 %v207
    %v976 = vunpack.c.l.b16 %v208
    %v977 = vunpack.c.l.b16 %v209
    %v978 = vunpack.c.l.b16 %v210
    %v979 = vunpack.c.l.b16 %v211
    %v980 = vunpack.c.l.b16 %v212
    %v981 = vunpack.c.l.b16 %v213
    %v982 = vunpack.c.l.b16 %v214
    %v983 = vunpack.c.l.b16 %v215
    %v984 = vunpack.c.l.b16 %v216
    %v985 = vunpack.c.l.b16 %v217
    %v986 = vunpack.c.l.b16 %v218
    %v987 = vunpack.c.l.b16 %v219
    %v988 = vunpack.c.l.b16 %v220
    %v989 = vunpack.c.l.b16 %v221
    %v990 = vunpack.c.l.b16 %v222
    %v991 = vunpack.c.l.b16 %v223
    %v992 = vunpack.c.l.b16 %v224
    %v993 = vunpack.c.l.b16 %v225
    %v994 = vunpack.c.l.b16 %v226
    %v995 = vunpack.c.l.b16 %v227
    %v996 = vunpack.c.l.b16 %v228
    %v997 = vunpack.c.l.b16 %v229
    %v998 = vunpack.c.l.b16 %v230
    %v999 = vunpack.c.l.b16 %v231
    %v1000 = vunpack.c.l.b16 %v232
    %v1001 = vunpack.c.l.b16 %v233
    %v1002 = vunpack.c.l.b16 %v234
    %v1003 = vunpack.c.l.b16 %v235
    %v1004 = vunpack.c.l.b16 %v236
    %v1005 = vunpack.c.l.b16 %v237
    %v1006 = vunpack.c.l.b16 %v238
    %v1007 = vunpack.c.l.b16 %v239
    %v1008 = vunpack.c.l.b16 %v240
    %v1009 = vunpack.c.l.b16 %v241
    %v1010 = vunpack.c.l.b16 %v242
    %v1011 = vunpack.c.l.b16 %v243
    %v1012 = vunpack.c.l.b16 %v244
    %v1013 = vunpack.c.l.b16 %v245
    %v1014 = vunpack.c.l.b16 %v246
    %v1015 = vpack.c.b16 %v952, %v951
    %v1016 = vpack.c.b16 %v954, %v953
    %v1017 = vpack.c.b16 %v956, %v955
    %v1018 = vpack.c.b16 %v958, %v957
    %v1019 = vpack.c.b16 %v960, %v959
    %v1020 = vpack.c.b16 %v962, %v961
    %v1021 = vpack.c.b16 %v964, %v963
    %v1022 = vpack.c.b16 %v966, %v965
    %v1023 = vpack.c.b16 %v968, %v967
    %v1024 = vpack.c.b16 %v970, %v969
    %v1025 = vpack.c.b16 %v972, %v971
    %v1026 = vpack.c.b16 %v974, %v973
    %v1027 = vpack.c.b16 %v976, %v975
    %v1028 = vpack.c.b16 %v978, %v977
    %v1029 = vpack.c.b16 %v980, %v979
    %v1030 = vpack.c.b16 %v982, %v981
    %v1031 = vpack.c.b16 %v984, %v983
    %v1032 = vpack.c.b16 %v986, %v985
    %v1033 = vpack.c.b16 %v988, %v987
    %v1034 = vpack.c.b16 %v990, %v989
    %v1035 = vpack.c.b16 %v992, %v991
    %v1036 = vpack.c.b16 %v994, %v993
    %v1037 = vpack.c.b16 %v996, %v995
    %v1038 = vpack.c.b16 %v998, %v997
    %v1039 = vpack.c.b16 %v1000, %v999
    %v1040 = vpack.c.b16 %v1002, %v1001
    %v1041 = vpack.c.b16 %v1004, %v1003
    %v1042 = vpack.c.b16 %v1006, %v1005
    %v1043 = vpack.c.b16 %v1008, %v1007
    %v1044 = vpack.c.b16 %v1010, %v1009
    %v1045 = vpack.c.b16 %v1012, %v1011
    %v1046 = vpack.c.b16 %v1014, %v1013
    %1079 = vmatprep.subr.bf16.mxu0 0
    %1080 = vmatpush1.bf16.msra.mxu0 %v1015
    %1081 = vmatprep.subr.bf16.mxu0 0
    %1082 = vmatpush1.bf16.msra.mxu0 %v1016
    %1083 = vmatprep.subr.bf16.mxu0 0
    %1084 = vmatpush1.bf16.msra.mxu0 %v1017
    %1085 = vmatprep.subr.bf16.mxu0 0
    %1086 = vmatpush1.bf16.msra.mxu0 %v1018
    %1087 = vmatprep.subr.bf16.mxu0 0
    %1088 = vmatpush1.bf16.msra.mxu0 %v1019
    %1089 = vmatprep.subr.bf16.mxu0 0
    %1090 = vmatpush1.bf16.msra.mxu0 %v1020
    %1091 = vmatprep.subr.bf16.mxu0 0
    %1092 = vmatpush1.bf16.msra.mxu0 %v1021
    %1093 = vmatprep.subr.bf16.mxu0 0
    %1094 = vmatpush1.bf16.msra.mxu0 %v1022
    %1095 = vmatprep.subr.bf16.mxu0 0
    %1096 = vmatpush1.bf16.msra.mxu0 %v1023
    %1097 = vmatprep.subr.bf16.mxu0 0
    %1098 = vmatpush1.bf16.msra.mxu0 %v1024
    %1099 = vmatprep.subr.bf16.mxu0 0
    %1100 = vmatpush1.bf16.msra.mxu0 %v1025
    %1101 = vmatprep.subr.bf16.mxu0 0
    %1102 = vmatpush1.bf16.msra.mxu0 %v1026
    %1103 = vmatprep.subr.bf16.mxu0 0
    %1104 = vmatpush1.bf16.msra.mxu0 %v1027
    %1105 = vmatprep.subr.bf16.mxu0 0
    %1106 = vmatpush1.bf16.msra.mxu0 %v1028
    %1107 = vmatprep.subr.bf16.mxu0 0
    %1108 = vmatpush1.bf16.msra.mxu0 %v1029
    %1109 = vmatprep.subr.bf16.mxu0 0
    %1110 = vmatpush1.bf16.msra.mxu0 %v1030
    %1111 = vmatprep.mubr.bf16.mxu0 %v632
    %1112 = vmatmul.mubr.bf16.gmra.mrb[0].mxu0 %v631
    %v1113 = vpop.f32.mrb[0].mxu0
    %v1114 = vadd.f32 0.0, %v1113
    %v1115 = vpop.f32.mrb[0].mxu0
    %v1116 = vpop.f32.mrb[0].mxu0
    %v1117 = vadd.f32 0.0, %v1116
    %v1118 = vpop.f32.mrb[0].mxu0
    %1119 = vmatprep.mubr.bf16.mxu0 %v636
    %1120 = vmatmul.mubr.bf16.gmra.mrb[0].mxu0 %v635
    %v1121 = vpop.f32.mrb[0].mxu0
    %v1122 = vadd.f32 0.0, %v1121
    %v1123 = vpop.f32.mrb[0].mxu0
    %v1124 = vpop.f32.mrb[0].mxu0
    %v1125 = vadd.f32 0.0, %v1124
    %v1126 = vpop.f32.mrb[0].mxu0
    %1127 = vmatprep.mubr.bf16.mxu0 %v640
    %1128 = vmatmul.mubr.bf16.gmra.mrb[0].mxu0 %v639
    %v1129 = vpop.f32.mrb[0].mxu0
    %v1130 = vadd.f32 0.0, %v1129
    %v1131 = vpop.f32.mrb[0].mxu0
    %v1132 = vpop.f32.mrb[0].mxu0
    %v1133 = vadd.f32 0.0, %v1132
    %v1134 = vpop.f32.mrb[0].mxu0
    %1135 = vmatprep.mubr.bf16.mxu0 %v644
    %1136 = vmatmul.mubr.bf16.gmra.mrb[0].mxu0 %v643
    %v1137 = vpop.f32.mrb[0].mxu0
    %v1138 = vadd.f32 0.0, %v1137
    %v1139 = vpop.f32.mrb[0].mxu0
    %v1140 = vpop.f32.mrb[0].mxu0
    %v1141 = vadd.f32 0.0, %v1140
    %v1142 = vpop.f32.mrb[0].mxu0
    %1143 = vmatprep.mubr.bf16.mxu0 %v648
    %1144 = vmatmul.mubr.bf16.gmra.mrb[0].mxu0 %v647
    %v1145 = vpop.f32.mrb[0].mxu0
    %v1146 = vadd.f32 0.0, %v1145
    %v1147 = vpop.f32.mrb[0].mxu0
    %v1148 = vpop.f32.mrb[0].mxu0
    %v1149 = vadd.f32 0.0, %v1148
    %v1150 = vpop.f32.mrb[0].mxu0
    %1151 = vmatprep.mubr.bf16.mxu0 %v652
    %1152 = vmatmul.mubr.bf16.gmra.mrb[0].mxu0 %v651
    %v1153 = vpop.f32.mrb[0].mxu0
    %v1154 = vadd.f32 0.0, %v1153
    %v1155 = vpop.f32.mrb[0].mxu0
    %v1156 = vpop.f32.mrb[0].mxu0
    %v1157 = vadd.f32 0.0, %v1156
    %v1158 = vpop.f32.mrb[0].mxu0
    %1159 = vmatprep.mubr.bf16.mxu0 %v656
    %1160 = vmatmul.mubr.bf16.gmra.mrb[0].mxu0 %v655
    %v1161 = vpop.f32.mrb[0].mxu0
    %v1162 = vadd.f32 0.0, %v1161
    %v1163 = vpop.f32.mrb[0].mxu0
    %v1164 = vpop.f32.mrb[0].mxu0
    %v1165 = vadd.f32 0.0, %v1164
    %v1166 = vpop.f32.mrb[0].mxu0
    %1167 = vmatprep.mubr.bf16.mxu0 %v660
    %1168 = vmatmul.mubr.bf16.gmra.mrb[0].mxu0 %v659
    %v1169 = vpop.f32.mrb[0].mxu0
    %v1170 = vadd.f32 0.0, %v1169
    %v1171 = vpop.f32.mrb[0].mxu0
    %v1172 = vpop.f32.mrb[0].mxu0
    %v1173 = vadd.f32 0.0, %v1172
    %v1174 = vpop.f32.mrb[0].mxu0
    %1175 = vmatprep.mubr.bf16.mxu0 %v664
    %1176 = vmatmul.mubr.bf16.gmra.mrb[0].mxu0 %v663
    %v1177 = vpop.f32.mrb[0].mxu0
    %v1178 = vadd.f32 0.0, %v1177
    %v1179 = vpop.f32.mrb[0].mxu0
    %v1180 = vpop.f32.mrb[0].mxu0
    %v1181 = vadd.f32 0.0, %v1180
    %v1182 = vpop.f32.mrb[0].mxu0
    %1183 = vmatprep.mubr.bf16.mxu0 %v668
    %1184 = vmatmul.mubr.bf16.gmra.mrb[0].mxu0 %v667
    %v1185 = vpop.f32.mrb[0].mxu0
    %v1186 = vadd.f32 0.0, %v1185
    %v1187 = vpop.f32.mrb[0].mxu0
    %v1188 = vpop.f32.mrb[0].mxu0
    %v1189 = vadd.f32 0.0, %v1188
    %v1190 = vpop.f32.mrb[0].mxu0
    %1191 = vmatprep.mubr.bf16.mxu0 %v672
    %1192 = vmatmul.mubr.bf16.gmra.mrb[0].mxu0 %v671
    %v1193 = vpop.f32.mrb[0].mxu0
    %v1194 = vadd.f32 0.0, %v1193
    %v1195 = vpop.f32.mrb[0].mxu0
    %v1196 = vpop.f32.mrb[0].mxu0
    %v1197 = vadd.f32 0.0, %v1196
    %v1198 = vpop.f32.mrb[0].mxu0
    %1199 = vmatprep.mubr.bf16.mxu0 %v676
    %1200 = vmatmul.mubr.bf16.gmra.mrb[0].mxu0 %v675
    %v1201 = vpop.f32.mrb[0].mxu0
    %v1202 = vadd.f32 0.0, %v1201
    %v1203 = vpop.f32.mrb[0].mxu0
    %v1204 = vpop.f32.mrb[0].mxu0
    %v1205 = vadd.f32 0.0, %v1204
    %v1206 = vpop.f32.mrb[0].mxu0
    %1207 = vmatprep.mubr.bf16.mxu0 %v680
    %1208 = vmatmul.mubr.bf16.gmra.mrb[0].mxu0 %v679
    %v1209 = vpop.f32.mrb[0].mxu0
    %v1210 = vadd.f32 0.0, %v1209
    %v1211 = vpop.f32.mrb[0].mxu0
    %v1212 = vpop.f32.mrb[0].mxu0
    %v1213 = vadd.f32 0.0, %v1212
    %v1214 = vpop.f32.mrb[0].mxu0
    %1215 = vmatprep.mubr.bf16.mxu0 %v684
    %1216 = vmatmul.mubr.bf16.gmra.mrb[0].mxu0 %v683
    %v1217 = vpop.f32.mrb[0].mxu0
    %v1218 = vadd.f32 0.0, %v1217
    %v1219 = vpop.f32.mrb[0].mxu0
    %v1220 = vpop.f32.mrb[0].mxu0
    %v1221 = vadd.f32 0.0, %v1220
    %v1222 = vpop.f32.mrb[0].mxu0
    %1223 = vmatprep.mubr.bf16.mxu0 %v688
    %1224 = vmatmul.mubr.bf16.gmra.mrb[0].mxu0 %v687
    %v1225 = vpop.f32.mrb[0].mxu0
    %v1226 = vadd.f32 0.0, %v1225
    %v1227 = vpop.f32.mrb[0].mxu0
    %v1228 = vpop.f32.mrb[0].mxu0
    %v1229 = vadd.f32 0.0, %v1228
    %v1230 = vpop.f32.mrb[0].mxu0
    %1231 = vmatprep.mubr.bf16.mxu0 %v692
    %1232 = vmatmul.mubr.bf16.gmra.mrb[0].mxu0 %v691
    %v1233 = vpop.f32.mrb[0].mxu0
    %v1234 = vadd.f32 0.0, %v1233
    %v1235 = vpop.f32.mrb[0].mxu0
    %v1236 = vpop.f32.mrb[0].mxu0
    %v1237 = vadd.f32 0.0, %v1236
    %v1238 = vpop.f32.mrb[0].mxu0
    %1239 = vmatprep.mubr.bf16.mxu0 %v696
    %1240 = vmatmul.mubr.bf16.gmra.mrb[0].mxu0 %v695
    %v1241 = vpop.f32.mrb[0].mxu0
    %v1242 = vadd.f32 0.0, %v1241
    %v1243 = vpop.f32.mrb[0].mxu0
    %v1244 = vpop.f32.mrb[0].mxu0
    %v1245 = vadd.f32 0.0, %v1244
    %v1246 = vpop.f32.mrb[0].mxu0
    %1247 = vmatprep.mubr.bf16.mxu0 %v700
    %1248 = vmatmul.mubr.bf16.gmra.mrb[0].mxu0 %v699
    %v1249 = vpop.f32.mrb[0].mxu0
    %v1250 = vadd.f32 0.0, %v1249
    %v1251 = vpop.f32.mrb[0].mxu0
    %v1252 = vpop.f32.mrb[0].mxu0
    %v1253 = vadd.f32 0.0, %v1252
    %v1254 = vpop.f32.mrb[0].mxu0
    %1255 = vmatprep.mubr.bf16.mxu0 %v704
    %1256 = vmatmul.mubr.bf16.gmra.mrb[0].mxu0 %v703
    %v1257 = vpop.f32.mrb[0].mxu0
    %v1258 = vadd.f32 0.0, %v1257
    %v1259 = vpop.f32.mrb[0].mxu0
    %v1260 = vpop.f32.mrb[0].mxu0
    %v1261 = vadd.f32 0.0, %v1260
    %v1262 = vpop.f32.mrb[0].mxu0
    %1263 = vmatprep.mubr.bf16.mxu0 %v708
    %1264 = vmatmul.mubr.bf16.gmra.mrb[0].mxu0 %v707
    %v1265 = vpop.f32.mrb[0].mxu0
    %v1266 = vadd.f32 0.0, %v1265
    %v1267 = vpop.f32.mrb[0].mxu0
    %v1268 = vpop.f32.mrb[0].mxu0
    %v1269 = vadd.f32 0.0, %v1268
    %v1270 = vpop.f32.mrb[0].mxu0
    %1271 = vmatprep.mubr.bf16.mxu0 %v712
    %1272 = vmatmul.mubr.bf16.gmra.mrb[0].mxu0 %v711
    %v1273 = vpop.f32.mrb[0].mxu0
    %v1274 = vadd.f32 0.0, %v1273
    %v1275 = vpop.f32.mrb[0].mxu0
    %v1276 = vpop.f32.mrb[0].mxu0
    %v1277 = vadd.f32 0.0, %v1276
    %v1278 = vpop.f32.mrb[0].mxu0
    %1279 = vmatprep.mubr.bf16.mxu0 %v716
    %1280 = vmatmul.mubr.bf16.gmra.mrb[0].mxu0 %v715
    %v1281 = vpop.f32.mrb[0].mxu0
    %v1282 = vadd.f32 0.0, %v1281
    %v1283 = vpop.f32.mrb[0].mxu0
    %v1284 = vpop.f32.mrb[0].mxu0
    %v1285 = vadd.f32 0.0, %v1284
    %v1286 = vpop.f32.mrb[0].mxu0
    %1287 = vmatprep.mubr.bf16.mxu0 %v720
    %1288 = vmatmul.mubr.bf16.gmra.mrb[0].mxu0 %v719
    %v1289 = vpop.f32.mrb[0].mxu0
    %v1290 = vadd.f32 0.0, %v1289
    %v1291 = vpop.f32.mrb[0].mxu0
    %v1292 = vpop.f32.mrb[0].mxu0
    %v1293 = vadd.f32 0.0, %v1292
    %v1294 = vpop.f32.mrb[0].mxu0
    %1295 = vmatprep.mubr.bf16.mxu0 %v724
    %1296 = vmatmul.mubr.bf16.gmra.mrb[0].mxu0 %v723
    %v1297 = vpop.f32.mrb[0].mxu0
    %v1298 = vadd.f32 0.0, %v1297
    %v1299 = vpop.f32.mrb[0].mxu0
    %v1300 = vpop.f32.mrb[0].mxu0
    %v1301 = vadd.f32 0.0, %v1300
    %v1302 = vpop.f32.mrb[0].mxu0
    %1303 = vmatprep.mubr.bf16.mxu0 %v728
    %1304 = vmatmul.mubr.bf16.gmra.mrb[0].mxu0 %v727
    %v1305 = vpop.f32.mrb[0].mxu0
    %v1306 = vadd.f32 0.0, %v1305
    %v1307 = vpop.f32.mrb[0].mxu0
    %v1308 = vpop.f32.mrb[0].mxu0
    %v1309 = vadd.f32 0.0, %v1308
    %v1310 = vpop.f32.mrb[0].mxu0
    %1311 = vmatprep.mubr.bf16.mxu0 %v732
    %1312 = vmatmul.mubr.bf16.gmra.mrb[0].mxu0 %v731
    %v1313 = vpop.f32.mrb[0].mxu0
    %v1314 = vadd.f32 0.0, %v1313
    %v1315 = vpop.f32.mrb[0].mxu0
    %v1316 = vpop.f32.mrb[0].mxu0
    %v1317 = vadd.f32 0.0, %v1316
    %v1318 = vpop.f32.mrb[0].mxu0
    %1319 = vmatprep.mubr.bf16.mxu0 %v736
    %1320 = vmatmul.mubr.bf16.gmra.mrb[0].mxu0 %v735
    %v1321 = vpop.f32.mrb[0].mxu0
    %v1322 = vadd.f32 0.0, %v1321
    %v1323 = vpop.f32.mrb[0].mxu0
    %v1324 = vpop.f32.mrb[0].mxu0
    %v1325 = vadd.f32 0.0, %v1324
    %v1326 = vpop.f32.mrb[0].mxu0
    %1327 = vmatprep.mubr.bf16.mxu0 %v740
    %1328 = vmatmul.mubr.bf16.gmra.mrb[0].mxu0 %v739
    %v1329 = vpop.f32.mrb[0].mxu0
    %v1330 = vadd.f32 0.0, %v1329
    %v1331 = vpop.f32.mrb[0].mxu0
    %v1332 = vpop.f32.mrb[0].mxu0
    %v1333 = vadd.f32 0.0, %v1332
    %v1334 = vpop.f32.mrb[0].mxu0
    %1335 = vmatprep.mubr.bf16.mxu0 %v744
    %1336 = vmatmul.mubr.bf16.gmra.mrb[0].mxu0 %v743
    %v1337 = vpop.f32.mrb[0].mxu0
    %v1338 = vadd.f32 0.0, %v1337
    %v1339 = vpop.f32.mrb[0].mxu0
    %v1340 = vpop.f32.mrb[0].mxu0
    %v1341 = vadd.f32 0.0, %v1340
    %v1342 = vpop.f32.mrb[0].mxu0
    %1343 = vmatprep.mubr.bf16.mxu0 %v748
    %1344 = vmatmul.mubr.bf16.gmra.mrb[0].mxu0 %v747
    %v1345 = vpop.f32.mrb[0].mxu0
    %v1346 = vadd.f32 0.0, %v1345
    %v1347 = vpop.f32.mrb[0].mxu0
    %v1348 = vpop.f32.mrb[0].mxu0
    %v1349 = vadd.f32 0.0, %v1348
    %v1350 = vpop.f32.mrb[0].mxu0
    %1351 = vmatprep.mubr.bf16.mxu0 %v752
    %1352 = vmatmul.mubr.bf16.gmra.mrb[0].mxu0 %v751
    %v1353 = vpop.f32.mrb[0].mxu0
    %v1354 = vadd.f32 0.0, %v1353
    %v1355 = vpop.f32.mrb[0].mxu0
    %v1356 = vpop.f32.mrb[0].mxu0
    %v1357 = vadd.f32 0.0, %v1356
    %v1358 = vpop.f32.mrb[0].mxu0
    %1359 = vmatprep.mubr.bf16.mxu0 %v756
    %1360 = vmatmul.mubr.bf16.gmra.mrb[0].mxu0 %v755
    %v1361 = vpop.f32.mrb[0].mxu0
    %v1362 = vadd.f32 0.0, %v1361
    %v1363 = vpop.f32.mrb[0].mxu0
    %v1364 = vpop.f32.mrb[0].mxu0
    %v1365 = vadd.f32 0.0, %v1364
    %v1366 = vpop.f32.mrb[0].mxu0
    %1367 = vdwg.mxu0
    %1368 = vmatprep.subr.bf16.mxu0 0
    %1369 = vmatpush1.bf16.msra.mxu0 %v1031
    %1370 = vmatprep.subr.bf16.mxu0 0
    %1371 = vmatpush1.bf16.msra.mxu0 %v1032
    %1372 = vmatprep.subr.bf16.mxu0 0
    %1373 = vmatpush1.bf16.msra.mxu0 %v1033
    %1374 = vmatprep.subr.bf16.mxu0 0
    %1375 = vmatpush1.bf16.msra.mxu0 %v1034
    %1376 = vmatprep.subr.bf16.mxu0 0
    %1377 = vmatpush1.bf16.msra.mxu0 %v1035
    %1378 = vmatprep.subr.bf16.mxu0 0
    %1379 = vmatpush1.bf16.msra.mxu0 %v1036
    %1380 = vmatprep.subr.bf16.mxu0 0
    %1381 = vmatpush1.bf16.msra.mxu0 %v1037
    %1382 = vmatprep.subr.bf16.mxu0 0
    %1383 = vmatpush1.bf16.msra.mxu0 %v1038
    %1384 = vmatprep.subr.bf16.mxu0 0
    %1385 = vmatpush1.bf16.msra.mxu0 %v1039
    %1386 = vmatprep.subr.bf16.mxu0 0
    %1387 = vmatpush1.bf16.msra.mxu0 %v1040
    %1388 = vmatprep.subr.bf16.mxu0 0
    %1389 = vmatpush1.bf16.msra.mxu0 %v1041
    %1390 = vmatprep.subr.bf16.mxu0 0
    %1391 = vmatpush1.bf16.msra.mxu0 %v1042
    %1392 = vmatprep.subr.bf16.mxu0 0
    %1393 = vmatpush1.bf16.msra.mxu0 %v1043
    %1394 = vmatprep.subr.bf16.mxu0 0
    %1395 = vmatpush1.bf16.msra.mxu0 %v1044
    %1396 = vmatprep.subr.bf16.mxu0 0
    %1397 = vmatpush1.bf16.msra.mxu0 %v1045
    %1398 = vmatprep.subr.bf16.mxu0 0
    %1399 = vmatpush1.bf16.msra.mxu0 %v1046
    %1400 = vmatprep.mubr.bf16.mxu0 %v634
    %1401 = vmatmul.mubr.bf16.gmra.mrb[0].mxu0 %v633
    %v1402 = vpop.f32.mrb[0].mxu0
    %v1403 = vadd.f32 %v1114, %v1402
    %v1404 = vpop.f32.mrb[0].mxu0
    %v1405 = vpop.f32.mrb[0].mxu0
    %v1406 = vadd.f32 %v1117, %v1405
    %v1407 = vpop.f32.mrb[0].mxu0
    %1408 = vmatprep.mubr.bf16.mxu0 %v638
    %1409 = vmatmul.mubr.bf16.gmra.mrb[0].mxu0 %v637
    %v1410 = vpop.f32.mrb[0].mxu0
    %v1411 = vadd.f32 %v1122, %v1410
    %v1412 = vpop.f32.mrb[0].mxu0
    %v1413 = vpop.f32.mrb[0].mxu0
    %v1414 = vadd.f32 %v1125, %v1413
    %v1415 = vpop.f32.mrb[0].mxu0
    %1416 = vmatprep.mubr.bf16.mxu0 %v642
    %1417 = vmatmul.mubr.bf16.gmra.mrb[0].mxu0 %v641
    %v1418 = vpop.f32.mrb[0].mxu0
    %v1419 = vadd.f32 %v1130, %v1418
    %v1420 = vpop.f32.mrb[0].mxu0
    %v1421 = vpop.f32.mrb[0].mxu0
    %v1422 = vadd.f32 %v1133, %v1421
    %v1423 = vpop.f32.mrb[0].mxu0
    %1424 = vmatprep.mubr.bf16.mxu0 %v646
    %1425 = vmatmul.mubr.bf16.gmra.mrb[0].mxu0 %v645
    %v1426 = vpop.f32.mrb[0].mxu0
    %v1427 = vadd.f32 %v1138, %v1426
    %v1428 = vpop.f32.mrb[0].mxu0
    %v1429 = vpop.f32.mrb[0].mxu0
    %v1430 = vadd.f32 %v1141, %v1429
    %v1431 = vpop.f32.mrb[0].mxu0
    %1432 = vmatprep.mubr.bf16.mxu0 %v650
    %1433 = vmatmul.mubr.bf16.gmra.mrb[0].mxu0 %v649
    %v1434 = vpop.f32.mrb[0].mxu0
    %v1435 = vadd.f32 %v1146, %v1434
    %v1436 = vpop.f32.mrb[0].mxu0
    %v1437 = vpop.f32.mrb[0].mxu0
    %v1438 = vadd.f32 %v1149, %v1437
    %v1439 = vpop.f32.mrb[0].mxu0
    %1440 = vmatprep.mubr.bf16.mxu0 %v654
    %1441 = vmatmul.mubr.bf16.gmra.mrb[0].mxu0 %v653
    %v1442 = vpop.f32.mrb[0].mxu0
    %v1443 = vadd.f32 %v1154, %v1442
    %v1444 = vpop.f32.mrb[0].mxu0
    %v1445 = vpop.f32.mrb[0].mxu0
    %v1446 = vadd.f32 %v1157, %v1445
    %v1447 = vpop.f32.mrb[0].mxu0
    %1448 = vmatprep.mubr.bf16.mxu0 %v658
    %1449 = vmatmul.mubr.bf16.gmra.mrb[0].mxu0 %v657
    %v1450 = vpop.f32.mrb[0].mxu0
    %v1451 = vadd.f32 %v1162, %v1450
    %v1452 = vpop.f32.mrb[0].mxu0
    %v1453 = vpop.f32.mrb[0].mxu0
    %v1454 = vadd.f32 %v1165, %v1453
    %v1455 = vpop.f32.mrb[0].mxu0
    %1456 = vmatprep.mubr.bf16.mxu0 %v662
    %1457 = vmatmul.mubr.bf16.gmra.mrb[0].mxu0 %v661
    %v1458 = vpop.f32.mrb[0].mxu0
    %v1459 = vadd.f32 %v1170, %v1458
    %v1460 = vpop.f32.mrb[0].mxu0
    %v1461 = vpop.f32.mrb[0].mxu0
    %v1462 = vadd.f32 %v1173, %v1461
    %v1463 = vpop.f32.mrb[0].mxu0
    %1464 = vmatprep.mubr.bf16.mxu0 %v666
    %1465 = vmatmul.mubr.bf16.gmra.mrb[0].mxu0 %v665
    %v1466 = vpop.f32.mrb[0].mxu0
    %v1467 = vadd.f32 %v1178, %v1466
    %v1468 = vpop.f32.mrb[0].mxu0
    %v1469 = vpop.f32.mrb[0].mxu0
    %v1470 = vadd.f32 %v1181, %v1469
    %v1471 = vpop.f32.mrb[0].mxu0
    %1472 = vmatprep.mubr.bf16.mxu0 %v670
    %1473 = vmatmul.mubr.bf16.gmra.mrb[0].mxu0 %v669
    %v1474 = vpop.f32.mrb[0].mxu0
    %v1475 = vadd.f32 %v1186, %v1474
    %v1476 = vpop.f32.mrb[0].mxu0
    %v1477 = vpop.f32.mrb[0].mxu0
    %v1478 = vadd.f32 %v1189, %v1477
    %v1479 = vpop.f32.mrb[0].mxu0
    %1480 = vmatprep.mubr.bf16.mxu0 %v674
    %1481 = vmatmul.mubr.bf16.gmra.mrb[0].mxu0 %v673
    %v1482 = vpop.f32.mrb[0].mxu0
    %v1483 = vadd.f32 %v1194, %v1482
    %v1484 = vpop.f32.mrb[0].mxu0
    %v1485 = vpop.f32.mrb[0].mxu0
    %v1486 = vadd.f32 %v1197, %v1485
    %v1487 = vpop.f32.mrb[0].mxu0
    %1488 = vmatprep.mubr.bf16.mxu0 %v678
    %1489 = vmatmul.mubr.bf16.gmra.mrb[0].mxu0 %v677
    %v1490 = vpop.f32.mrb[0].mxu0
    %v1491 = vadd.f32 %v1202, %v1490
    %v1492 = vpop.f32.mrb[0].mxu0
    %v1493 = vpop.f32.mrb[0].mxu0
    %v1494 = vadd.f32 %v1205, %v1493
    %v1495 = vpop.f32.mrb[0].mxu0
    %1496 = vmatprep.mubr.bf16.mxu0 %v682
    %1497 = vmatmul.mubr.bf16.gmra.mrb[0].mxu0 %v681
    %v1498 = vpop.f32.mrb[0].mxu0
    %v1499 = vadd.f32 %v1210, %v1498
    %v1500 = vpop.f32.mrb[0].mxu0
    %v1501 = vpop.f32.mrb[0].mxu0
    %v1502 = vadd.f32 %v1213, %v1501
    %v1503 = vpop.f32.mrb[0].mxu0
    %1504 = vmatprep.mubr.bf16.mxu0 %v686
    %1505 = vmatmul.mubr.bf16.gmra.mrb[0].mxu0 %v685
    %v1506 = vpop.f32.mrb[0].mxu0
    %v1507 = vadd.f32 %v1218, %v1506
    %v1508 = vpop.f32.mrb[0].mxu0
    %v1509 = vpop.f32.mrb[0].mxu0
    %v1510 = vadd.f32 %v1221, %v1509
    %v1511 = vpop.f32.mrb[0].mxu0
    %1512 = vmatprep.mubr.bf16.mxu0 %v690
    %1513 = vmatmul.mubr.bf16.gmra.mrb[0].mxu0 %v689
    %v1514 = vpop.f32.mrb[0].mxu0
    %v1515 = vadd.f32 %v1226, %v1514
    %v1516 = vpop.f32.mrb[0].mxu0
    %v1517 = vpop.f32.mrb[0].mxu0
    %v1518 = vadd.f32 %v1229, %v1517
    %v1519 = vpop.f32.mrb[0].mxu0
    %1520 = vmatprep.mubr.bf16.mxu0 %v694
    %1521 = vmatmul.mubr.bf16.gmra.mrb[0].mxu0 %v693
    %v1522 = vpop.f32.mrb[0].mxu0
    %v1523 = vadd.f32 %v1234, %v1522
    %v1524 = vpop.f32.mrb[0].mxu0
    %v1525 = vpop.f32.mrb[0].mxu0
    %v1526 = vadd.f32 %v1237, %v1525
    %v1527 = vpop.f32.mrb[0].mxu0
    %1528 = vmatprep.mubr.bf16.mxu0 %v698
    %1529 = vmatmul.mubr.bf16.gmra.mrb[0].mxu0 %v697
    %v1530 = vpop.f32.mrb[0].mxu0
    %v1531 = vadd.f32 %v1242, %v1530
    %v1532 = vpop.f32.mrb[0].mxu0
    %v1533 = vpop.f32.mrb[0].mxu0
    %v1534 = vadd.f32 %v1245, %v1533
    %v1535 = vpop.f32.mrb[0].mxu0
    %1536 = vmatprep.mubr.bf16.mxu0 %v702
    %1537 = vmatmul.mubr.bf16.gmra.mrb[0].mxu0 %v701
    %v1538 = vpop.f32.mrb[0].mxu0
    %v1539 = vadd.f32 %v1250, %v1538
    %v1540 = vpop.f32.mrb[0].mxu0
    %v1541 = vpop.f32.mrb[0].mxu0
    %v1542 = vadd.f32 %v1253, %v1541
    %v1543 = vpop.f32.mrb[0].mxu0
    %1544 = vmatprep.mubr.bf16.mxu0 %v706
    %1545 = vmatmul.mubr.bf16.gmra.mrb[0].mxu0 %v705
    %v1546 = vpop.f32.mrb[0].mxu0
    %v1547 = vadd.f32 %v1258, %v1546
    %v1548 = vpop.f32.mrb[0].mxu0
    %v1549 = vpop.f32.mrb[0].mxu0
    %v1550 = vadd.f32 %v1261, %v1549
    %v1551 = vpop.f32.mrb[0].mxu0
    %1552 = vmatprep.mubr.bf16.mxu0 %v710
    %1553 = vmatmul.mubr.bf16.gmra.mrb[0].mxu0 %v709
    %v1554 = vpop.f32.mrb[0].mxu0
    %v1555 = vadd.f32 %v1266, %v1554
    %v1556 = vpop.f32.mrb[0].mxu0
    %v1557 = vpop.f32.mrb[0].mxu0
    %v1558 = vadd.f32 %v1269, %v1557
    %v1559 = vpop.f32.mrb[0].mxu0
    %1560 = vmatprep.mubr.bf16.mxu0 %v714
    %1561 = vmatmul.mubr.bf16.gmra.mrb[0].mxu0 %v713
    %v1562 = vpop.f32.mrb[0].mxu0
    %v1563 = vadd.f32 %v1274, %v1562
    %v1564 = vpop.f32.mrb[0].mxu0
    %v1565 = vpop.f32.mrb[0].mxu0
    %v1566 = vadd.f32 %v1277, %v1565
    %v1567 = vpop.f32.mrb[0].mxu0
    %1568 = vmatprep.mubr.bf16.mxu0 %v718
    %1569 = vmatmul.mubr.bf16.gmra.mrb[0].mxu0 %v717
    %v1570 = vpop.f32.mrb[0].mxu0
    %v1571 = vadd.f32 %v1282, %v1570
    %v1572 = vpop.f32.mrb[0].mxu0
    %v1573 = vpop.f32.mrb[0].mxu0
    %v1574 = vadd.f32 %v1285, %v1573
    %v1575 = vpop.f32.mrb[0].mxu0
    %1576 = vmatprep.mubr.bf16.mxu0 %v722
    %1577 = vmatmul.mubr.bf16.gmra.mrb[0].mxu0 %v721
    %v1578 = vpop.f32.mrb[0].mxu0
    %v1579 = vadd.f32 %v1290, %v1578
    %v1580 = vpop.f32.mrb[0].mxu0
    %v1581 = vpop.f32.mrb[0].mxu0
    %v1582 = vadd.f32 %v1293, %v1581
    %v1583 = vpop.f32.mrb[0].mxu0
    %1584 = vmatprep.mubr.bf16.mxu0 %v726
    %1585 = vmatmul.mubr.bf16.gmra.mrb[0].mxu0 %v725
    %v1586 = vpop.f32.mrb[0].mxu0
    %v1587 = vadd.f32 %v1298, %v1586
    %v1588 = vpop.f32.mrb[0].mxu0
    %v1589 = vpop.f32.mrb[0].mxu0
    %v1590 = vadd.f32 %v1301, %v1589
    %v1591 = vpop.f32.mrb[0].mxu0
    %1592 = vmatprep.mubr.bf16.mxu0 %v730
    %1593 = vmatmul.mubr.bf16.gmra.mrb[0].mxu0 %v729
    %v1594 = vpop.f32.mrb[0].mxu0
    %v1595 = vadd.f32 %v1306, %v1594
    %v1596 = vpop.f32.mrb[0].mxu0
    %v1597 = vpop.f32.mrb[0].mxu0
    %v1598 = vadd.f32 %v1309, %v1597
    %v1599 = vpop.f32.mrb[0].mxu0
    %1600 = vmatprep.mubr.bf16.mxu0 %v734
    %1601 = vmatmul.mubr.bf16.gmra.mrb[0].mxu0 %v733
    %v1602 = vpop.f32.mrb[0].mxu0
    %v1603 = vadd.f32 %v1314, %v1602
    %v1604 = vpop.f32.mrb[0].mxu0
    %v1605 = vpop.f32.mrb[0].mxu0
    %v1606 = vadd.f32 %v1317, %v1605
    %v1607 = vpop.f32.mrb[0].mxu0
    %1608 = vmatprep.mubr.bf16.mxu0 %v738
    %1609 = vmatmul.mubr.bf16.gmra.mrb[0].mxu0 %v737
    %v1610 = vpop.f32.mrb[0].mxu0
    %v1611 = vadd.f32 %v1322, %v1610
    %v1612 = vpop.f32.mrb[0].mxu0
    %v1613 = vpop.f32.mrb[0].mxu0
    %v1614 = vadd.f32 %v1325, %v1613
    %v1615 = vpop.f32.mrb[0].mxu0
    %1616 = vmatprep.mubr.bf16.mxu0 %v742
    %1617 = vmatmul.mubr.bf16.gmra.mrb[0].mxu0 %v741
    %v1618 = vpop.f32.mrb[0].mxu0
    %v1619 = vadd.f32 %v1330, %v1618
    %v1620 = vpop.f32.mrb[0].mxu0
    %v1621 = vpop.f32.mrb[0].mxu0
    %v1622 = vadd.f32 %v1333, %v1621
    %v1623 = vpop.f32.mrb[0].mxu0
    %1624 = vmatprep.mubr.bf16.mxu0 %v746
    %1625 = vmatmul.mubr.bf16.gmra.mrb[0].mxu0 %v745
    %v1626 = vpop.f32.mrb[0].mxu0
    %v1627 = vadd.f32 %v1338, %v1626
    %v1628 = vpop.f32.mrb[0].mxu0
    %v1629 = vpop.f32.mrb[0].mxu0
    %v1630 = vadd.f32 %v1341, %v1629
    %v1631 = vpop.f32.mrb[0].mxu0
    %1632 = vmatprep.mubr.bf16.mxu0 %v750
    %1633 = vmatmul.mubr.bf16.gmra.mrb[0].mxu0 %v749
    %v1634 = vpop.f32.mrb[0].mxu0
    %v1635 = vadd.f32 %v1346, %v1634
    %v1636 = vpop.f32.mrb[0].mxu0
    %v1637 = vpop.f32.mrb[0].mxu0
    %v1638 = vadd.f32 %v1349, %v1637
    %v1639 = vpop.f32.mrb[0].mxu0
    %1640 = vmatprep.mubr.bf16.mxu0 %v754
    %1641 = vmatmul.mubr.bf16.gmra.mrb[0].mxu0 %v753
    %v1642 = vpop.f32.mrb[0].mxu0
    %v1643 = vadd.f32 %v1354, %v1642
    %v1644 = vpop.f32.mrb[0].mxu0
    %v1645 = vpop.f32.mrb[0].mxu0
    %v1646 = vadd.f32 %v1357, %v1645
    %v1647 = vpop.f32.mrb[0].mxu0
    %1648 = vmatprep.mubr.bf16.mxu0 %v758
    %1649 = vmatmul.mubr.bf16.gmra.mrb[0].mxu0 %v757
    %v1650 = vpop.f32.mrb[0].mxu0
    %v1651 = vadd.f32 %v1362, %v1650
    %v1652 = vpop.f32.mrb[0].mxu0
    %v1653 = vpop.f32.mrb[0].mxu0
    %v1654 = vadd.f32 %v1365, %v1653
    %v1655 = vpop.f32.mrb[0].mxu0
    %1656 = vdwg.mxu0
    %v1657 = vmax.f32 %v1403, 0.0
    %v1658 = vmax.f32 %v1406, 0.0
    %v1659 = vmax.f32 %v1411, 0.0
    %v1660 = vmax.f32 %v1414, 0.0
    %v1661 = vmax.f32 %v1419, 0.0
    %v1662 = vmax.f32 %v1422, 0.0
    %v1663 = vmax.f32 %v1427, 0.0
    %v1664 = vmax.f32 %v1430, 0.0
    %v1665 = vmax.f32 %v1435, 0.0
    %v1666 = vmax.f32 %v1438, 0.0
    %v1667 = vmax.f32 %v1443, 0.0
    %v1668 = vmax.f32 %v1446, 0.0
    %v1669 = vmax.f32 %v1451, 0.0
    %v1670 = vmax.f32 %v1454, 0.0
    %v1671 = vmax.f32 %v1459, 0.0
    %v1672 = vmax.f32 %v1462, 0.0
    %v1673 = vmax.f32 %v1467, 0.0
    %v1674 = vmax.f32 %v1470, 0.0
    %v1675 = vmax.f32 %v1475, 0.0
    %v1676 = vmax.f32 %v1478, 0.0
    %v1677 = vmax.f32 %v1483, 0.0
    %v1678 = vmax.f32 %v1486, 0.0
    %v1679 = vmax.f32 %v1491, 0.0
    %v1680 = vmax.f32 %v1494, 0.0
    %v1681 = vmax.f32 %v1499, 0.0
    %v1682 = vmax.f32 %v1502, 0.0
    %v1683 = vmax.f32 %v1507, 0.0
    %v1684 = vmax.f32 %v1510, 0.0
    %v1685 = vmax.f32 %v1515, 0.0
    %v1686 = vmax.f32 %v1518, 0.0
    %v1687 = vmax.f32 %v1523, 0.0
    %v1688 = vmax.f32 %v1526, 0.0
    %v1689 = vmax.f32 %v1531, 0.0
    %v1690 = vmax.f32 %v1534, 0.0
    %v1691 = vmax.f32 %v1539, 0.0
    %v1692 = vmax.f32 %v1542, 0.0
    %v1693 = vmax.f32 %v1547, 0.0
    %v1694 = vmax.f32 %v1550, 0.0
    %v1695 = vmax.f32 %v1555, 0.0
    %v1696 = vmax.f32 %v1558, 0.0
    %v1697 = vmax.f32 %v1563, 0.0
    %v1698 = vmax.f32 %v1566, 0.0
    %v1699 = vmax.f32 %v1571, 0.0
    %v1700 = vmax.f32 %v1574, 0.0
    %v1701 = vmax.f32 %v1579, 0.0
    %v1702 = vmax.f32 %v1582, 0.0
    %v1703 = vmax.f32 %v1587, 0.0
    %v1704 = vmax.f32 %v1590, 0.0
    %v1705 = vmax.f32 %v1595, 0.0
    %v1706 = vmax.f32 %v1598, 0.0
    %v1707 = vmax.f32 %v1603, 0.0
    %v1708 = vmax.f32 %v1606, 0.0
    %v1709 = vmax.f32 %v1611, 0.0
    %v1710 = vmax.f32 %v1614, 0.0
    %v1711 = vmax.f32 %v1619, 0.0
    %v1712 = vmax.f32 %v1622, 0.0
    %v1713 = vmax.f32 %v1627, 0.0
    %v1714 = vmax.f32 %v1630, 0.0
    %v1715 = vmax.f32 %v1635, 0.0
    %v1716 = vmax.f32 %v1638, 0.0
    %v1717 = vmax.f32 %v1643, 0.0
    %v1718 = vmax.f32 %v1646, 0.0
    %v1719 = vmax.f32 %v1651, 0.0
    %v1720 = vmax.f32 %v1654, 0.0
    %v1721 = vld [vmem:[#allocation7] sm:$0xff]
    %v1722 = vld [vmem:[#allocation7 + $0x8] sm:$0xff]
    %v1723 = vpack.c.bf16 %v1658, %v1657
    %v1724 = vpack.c.bf16 %v1660, %v1659
    %v1725 = vpack.c.bf16 %v1662, %v1661
    %v1726 = vpack.c.bf16 %v1664, %v1663
    %v1727 = vpack.c.bf16 %v1666, %v1665
    %v1728 = vpack.c.bf16 %v1668, %v1667
    %v1729 = vpack.c.bf16 %v1670, %v1669
    %v1730 = vpack.c.bf16 %v1672, %v1671
    %v1731 = vpack.c.bf16 %v1674, %v1673
    %v1732 = vpack.c.bf16 %v1676, %v1675
    %v1733 = vpack.c.bf16 %v1678, %v1677
    %v1734 = vpack.c.bf16 %v1680, %v1679
    %v1735 = vpack.c.bf16 %v1682, %v1681
    %v1736 = vpack.c.bf16 %v1684, %v1683
    %v1737 = vpack.c.bf16 %v1686, %v1685
    %v1738 = vpack.c.bf16 %v1688, %v1687
    %v1739 = vpack.c.bf16 %v1690, %v1689
    %v1740 = vpack.c.bf16 %v1692, %v1691
    %v1741 = vpack.c.bf16 %v1694, %v1693
    %v1742 = vpack.c.bf16 %v1696, %v1695
    %v1743 = vpack.c.bf16 %v1698, %v1697
    %v1744 = vpack.c.bf16 %v1700, %v1699
    %v1745 = vpack.c.bf16 %v1702, %v1701
    %v1746 = vpack.c.bf16 %v1704, %v1703
    %v1747 = vpack.c.bf16 %v1706, %v1705
    %v1748 = vpack.c.bf16 %v1708, %v1707
    %v1749 = vpack.c.bf16 %v1710, %v1709
    %v1750 = vpack.c.bf16 %v1712, %v1711
    %v1751 = vpack.c.bf16 %v1714, %v1713
    %v1752 = vpack.c.bf16 %v1716, %v1715
    %v1753 = vpack.c.bf16 %v1718, %v1717
    %v1754 = vpack.c.bf16 %v1720, %v1719
    %v1757 = vunpack.c.l.b16 %v1721
    %v1758 = vunpack.c.h.b16 %v1721
    %v1759 = vunpack.c.l.b16 %v1722
    %v1760 = vunpack.c.h.b16 %v1722
    %v1761 = vpack.c.b16 %v1757, %v1757
    %v1762 = vpack.c.b16 %v1758, %v1758
    %v1763 = vpack.c.b16 %v1759, %v1759
    %v1764 = vpack.c.b16 %v1760, %v1760
    %1769 = vmatprep.subr.bf16.mxu0 0
    %1770 = vmatpush1.bf16.msra.mxu0 %v1723
    %1771 = vmatprep.subr.bf16.mxu0 0
    %1772 = vmatpush1.bf16.msra.mxu0 %v1724
    %1773 = vmatprep.subr.bf16.mxu0 0
    %1774 = vmatpush1.bf16.msra.mxu0 %v1725
    %1775 = vmatprep.subr.bf16.mxu0 0
    %1776 = vmatpush1.bf16.msra.mxu0 %v1726
    %1777 = vmatprep.subr.bf16.mxu0 0
    %1778 = vmatpush1.bf16.msra.mxu0 %v1727
    %1779 = vmatprep.subr.bf16.mxu0 0
    %1780 = vmatpush1.bf16.msra.mxu0 %v1728
    %1781 = vmatprep.subr.bf16.mxu0 0
    %1782 = vmatpush1.bf16.msra.mxu0 %v1729
    %1783 = vmatprep.subr.bf16.mxu0 0
    %1784 = vmatpush1.bf16.msra.mxu0 %v1730
    %1785 = vmatprep.subr.bf16.mxu0 0
    %1786 = vmatpush1.bf16.msra.mxu0 %v1731
    %1787 = vmatprep.subr.bf16.mxu0 0
    %1788 = vmatpush1.bf16.msra.mxu0 %v1732
    %1789 = vmatprep.subr.bf16.mxu0 0
    %1790 = vmatpush1.bf16.msra.mxu0 %v1733
    %1791 = vmatprep.subr.bf16.mxu0 0
    %1792 = vmatpush1.bf16.msra.mxu0 %v1734
    %1793 = vmatprep.subr.bf16.mxu0 0
    %1794 = vmatpush1.bf16.msra.mxu0 %v1735
    %1795 = vmatprep.subr.bf16.mxu0 0
    %1796 = vmatpush1.bf16.msra.mxu0 %v1736
    %1797 = vmatprep.subr.bf16.mxu0 0
    %1798 = vmatpush1.bf16.msra.mxu0 %v1737
    %1799 = vmatprep.subr.bf16.mxu0 0
    %1800 = vmatpush1.bf16.msra.mxu0 %v1738
    %1801 = vmatprep.mubr.bf16.mxu0 %v1762
    %1802 = vmatmul.mubr.bf16.gmra.mrb[0].mxu0 %v1761
    %v1803 = vpop.f32.mrb[0].mxu0
    %v1804 = vadd.f32 0.0, %v1803
    %v1805 = vpop.f32.mrb[0].mxu0
    %v1806 = vpop.f32.mrb[0].mxu0
    %v1807 = vpop.f32.mrb[0].mxu0
    %1808 = vdwg.mxu0
    %1809 = vmatprep.subr.bf16.mxu0 0
    %1810 = vmatpush1.bf16.msra.mxu0 %v1739
    %1811 = vmatprep.subr.bf16.mxu0 0
    %1812 = vmatpush1.bf16.msra.mxu0 %v1740
    %1813 = vmatprep.subr.bf16.mxu0 0
    %1814 = vmatpush1.bf16.msra.mxu0 %v1741
    %1815 = vmatprep.subr.bf16.mxu0 0
    %1816 = vmatpush1.bf16.msra.mxu0 %v1742
    %1817 = vmatprep.subr.bf16.mxu0 0
    %1818 = vmatpush1.bf16.msra.mxu0 %v1743
    %1819 = vmatprep.subr.bf16.mxu0 0
    %1820 = vmatpush1.bf16.msra.mxu0 %v1744
    %1821 = vmatprep.subr.bf16.mxu0 0
    %1822 = vmatpush1.bf16.msra.mxu0 %v1745
    %1823 = vmatprep.subr.bf16.mxu0 0
    %1824 = vmatpush1.bf16.msra.mxu0 %v1746
    %1825 = vmatprep.subr.bf16.mxu0 0
    %1826 = vmatpush1.bf16.msra.mxu0 %v1747
    %1827 = vmatprep.subr.bf16.mxu0 0
    %1828 = vmatpush1.bf16.msra.mxu0 %v1748
    %1829 = vmatprep.subr.bf16.mxu0 0
    %1830 = vmatpush1.bf16.msra.mxu0 %v1749
    %1831 = vmatprep.subr.bf16.mxu0 0
    %1832 = vmatpush1.bf16.msra.mxu0 %v1750
    %1833 = vmatprep.subr.bf16.mxu0 0
    %1834 = vmatpush1.bf16.msra.mxu0 %v1751
    %1835 = vmatprep.subr.bf16.mxu0 0
    %1836 = vmatpush1.bf16.msra.mxu0 %v1752
    %1837 = vmatprep.subr.bf16.mxu0 0
    %1838 = vmatpush1.bf16.msra.mxu0 %v1753
    %1839 = vmatprep.subr.bf16.mxu0 0
    %1840 = vmatpush1.bf16.msra.mxu0 %v1754
    %1841 = vmatprep.mubr.bf16.mxu0 %v1764
    %1842 = vmatmul.mubr.bf16.gmra.mrb[0].mxu0 %v1763
    %v1843 = vpop.f32.mrb[0].mxu0
    %v1844 = vadd.f32 %v1804, %v1843
    %v1845 = vpop.f32.mrb[0].mxu0
    %v1846 = vpop.f32.mrb[0].mxu0
    %v1847 = vpop.f32.mrb[0].mxu0
    %1848 = vdwg.mxu0
    %1849 = vst [vmem:[#allocation8] sm:$0xff] %v1844
    // Predicated region
    $region26: #{tpu_custom_call.1} parent=1 // pred_check
      _
    $region27: #{tpu_custom_call.1} parent=1 // pred_check_branch
      %1851 = sbr.rel (0) target = $region29
    $region28: #{tpu_custom_call.1} parent=1 // pred_region
      %s1853 = ssub.s32 128, 128
      %1854 = vsyncadd [#allocation4], %s1853
      %s1856 = sshll.u32 [#allocation8], 4
      %s1857 = int_to_ptr.vmem [resolvable:$true] %s1856
      %1859 = dma.vmem_to_hbm [thread:$0]  %s1857, 128, %s3, [#allocation4]
    $region29: #{tpu_custom_call.1} parent=1 // pred_fallthru
      _
    // Predicated region
    $region30: #{tpu_custom_call.1} parent=1 // pred_check
      _
    $region31: #{tpu_custom_call.1} parent=1 // pred_check_branch
      %1861 = sbr.rel (0) target = $region33
    $region32: #{tpu_custom_call.1} parent=1 // pred_region
      %1862 = dma.done [#allocation4], 128
    $region33: #{tpu_custom_call.1} parent=1 // pred_fallthru
      _
    %1863 = vsyncpa [#allocation3], 1
    %1864 = vsyncpa [#allocation6], 1
    %1865 = vsyncpa [#allocation4], 1

</llo_original>
